<compile_context>
chip_gen: v5e
topology: v5e:2x2
jax: 0.10.0
libtpu: 0.0.40
codegen_flags: <defaults>
</compile_context>

<pallas_src>
import jax
import jax.numpy as jnp
from jax import lax
from jax.experimental import pallas as pl
from jax.experimental.pallas import tpu as pltpu
import numpy as np

HIDDEN_DIM = 64


def _namegen_kernel(tok_ref,                      # (T*Bp, 1) int32, time-major (row = t*Bp + b)
                    emb_ref,                      # (V+1, E)
                    wih0_ref, whh0_ref, b0_ref,   # (E,4H), (H,4H), (1,4H)  gate cols [f|i|o|g]
                    wih1_ref, whh1_ref, b1_ref,   # (H,4H), (H,4H), (1,4H)  gate cols [f|i|o|g]
                    wfc_ref, bfc_ref,             # (H,V), (1,V)
                    h_init_ref, c_init_ref,       # (2,Bp,H), (2,Bp,H)
                    logits_ref, hn_ref, cn_ref):  # outputs: (Bp,V), (2,Bp,H), (2,Bp,H)
    Bp = h_init_ref.shape[1]
    H = h_init_ref.shape[2]
    T = tok_ref.shape[0] // Bp
    Vp1 = emb_ref.shape[0]

    # ---- fused embedding lookup + layer-0 input projection for ALL timesteps (off critical path)
    tok = tok_ref[...]                                                # (T*Bp, 1) int32
    iota_v = lax.broadcasted_iota(jnp.int32, (T * Bp, Vp1), 1)
    onehot = (tok == iota_v).astype(jnp.float32)                      # (T*Bp, V+1)
    emb_w0 = jnp.dot(emb_ref[...], wih0_ref[...],
                     preferred_element_type=jnp.float32)              # (V+1, 4H)
    gin0_all = (jnp.dot(onehot, emb_w0, preferred_element_type=jnp.float32)
                + b0_ref[...])                                        # (T*Bp, 4H), b0 folded

    # ---- loop invariants hoisted once
    whh0_b = whh0_ref[...].astype(jnp.bfloat16)                       # bf16 MXU inputs,
    wih1_b = wih1_ref[...].astype(jnp.bfloat16)                       # f32 accumulation
    whh1_b = whh1_ref[...].astype(jnp.bfloat16)
    b1_b = jnp.broadcast_to(b1_ref[...], (Bp, 4 * H))
    halfmask = lax.broadcasted_iota(jnp.int32, (Bp, 2 * H), 1) < H    # lanes [0,H) True

    h0 = h_init_ref[0]
    h1 = h_init_ref[1]
    c0 = c_init_ref[0]
    c1 = c_init_ref[1]
    # carry cell state duplicated across lane halves: [c | c]  (keeps the update vreg-aligned)
    c0_2 = jnp.concatenate([c0, c0], axis=1)
    c1_2 = jnp.concatenate([c1, c1], axis=1)

    def lstm_cell(gates, c2):
        # gate columns pre-permuted to [f | i | o | g]; c2 = [c | c]
        fi_pre = gates[:, :2 * H]                                     # aligned full vreg
        og_pre = gates[:, 2 * H:]                                     # starts on a vreg boundary
        fi = jax.nn.sigmoid(fi_pre)                                   # [sig f | sig i]
        og = jnp.where(halfmask, jax.nn.sigmoid(og_pre), jnp.tanh(og_pre))  # [sig o | tanh g]
        prod = fi * jnp.where(halfmask, c2, og)                       # [f*c | i*g]
        c2_new = prod + pltpu.roll(prod, shift=H, axis=1)             # [c' | c']
        h_full = og * jnp.tanh(c2_new)                                # [o*tanh c' | junk]
        return h_full[:, :H], c2_new

    # ---- fully-unrolled recurrence; states stay vreg-resident (no scratch round-trips)
    for t in range(T):
        gin0_t = gin0_all[t * Bp:(t + 1) * Bp, :]                     # aligned sublane-group load
        # layer-1 recurrent matmul depends only on the previous step's h1 -> overlaps layer 0
        g1_rec = jnp.dot(h1.astype(jnp.bfloat16), whh1_b,
                         preferred_element_type=jnp.float32) + b1_b
        # layer 0: only the recurrent matmul sits on the serial chain
        g0 = jnp.dot(h0.astype(jnp.bfloat16), whh0_b,
                     preferred_element_type=jnp.float32) + gin0_t
        h0, c0_2 = lstm_cell(g0, c0_2)
        # layer 1: input projection once h0 is ready
        g1 = jnp.dot(h0.astype(jnp.bfloat16), wih1_b,
                     preferred_element_type=jnp.float32) + g1_rec
        h1, c1_2 = lstm_cell(g1, c1_2)

    # fc on the last timestep of the top layer (f32, once)
    logits_ref[...] = (jnp.dot(h1, wfc_ref[...],
                               preferred_element_type=jnp.float32) + bfc_ref[...])
    hn_ref[0] = h0
    hn_ref[1] = h1
    cn_ref[0] = c0_2[:, :H]
    cn_ref[1] = c1_2[:, :H]


def _permute_gate_cols(w, H):
    """Reorder gate blocks along the last dim: PyTorch [i,f,g,o] -> kernel [f,i,o,g]."""
    i = w[..., 0 * H:1 * H]
    f = w[..., 1 * H:2 * H]
    g = w[..., 2 * H:3 * H]
    o = w[..., 3 * H:4 * H]
    return jnp.concatenate([f, i, o, g], axis=-1)


def name_generator_forward(x_tokens, params, hidden):
    """x_tokens: (B, T) int32 in [0, vocab_size]; hidden: (h, c) each (2, B, H)."""
    h_init, c_init = hidden
    B, T = x_tokens.shape
    H = h_init.shape[-1]
    E = params["wih0"].shape[0]
    V = params["wfc"].shape[-1]
    Vp1 = params["emb"].shape[0]
    vocab_size = Vp1 - 1

    Bp = ((B + 7) // 8) * 8  # pad batch to a full sublane group (tile-aligned state ops)

    # time-major flattened padded token ids (row = t*Bp + b); pad rows use the padding token
    tok = jnp.full((Bp, T), vocab_size, jnp.int32).at[:B].set(x_tokens.astype(jnp.int32))
    tok_flat = tok.T.reshape(T * Bp, 1)

    # padded initial states
    h0p = jnp.zeros((2, Bp, H), jnp.float32).at[:, :B].set(h_init)
    c0p = jnp.zeros((2, Bp, H), jnp.float32).at[:, :B].set(c_init)

    # gate-column permutation (applied consistently to all gate weights/biases; kernel-only layout)
    wih0 = _permute_gate_cols(params["wih0"], H)
    whh0 = _permute_gate_cols(params["whh0"], H)
    b0 = _permute_gate_cols(params["b0"], H)
    wih1 = _permute_gate_cols(params["wih1"], H)
    whh1 = _permute_gate_cols(params["whh1"], H)
    b1 = _permute_gate_cols(params["b1"], H)

    full = lambda shape: pl.BlockSpec(shape, lambda i: (0,) * len(shape))

    out_shapes = (
        jax.ShapeDtypeStruct((Bp, V), jnp.float32),
        jax.ShapeDtypeStruct((2, Bp, H), jnp.float32),
        jax.ShapeDtypeStruct((2, Bp, H), jnp.float32),
    )

    grid_spec = pltpu.PrefetchScalarGridSpec(
        num_scalar_prefetch=0,
        grid=(1,),
        in_specs=[
            full((T * Bp, 1)),
            full((Vp1, E)),
            full((E, 4 * H)), full((H, 4 * H)), full((1, 4 * H)),
            full((H, 4 * H)), full((H, 4 * H)), full((1, 4 * H)),
            full((H, V)), full((1, V)),
            full((2, Bp, H)), full((2, Bp, H)),
        ],
        out_specs=[full((Bp, V)), full((2, Bp, H)), full((2, Bp, H))],
    )

    logits_p, hn_p, cn_p = pl.pallas_call(
        _namegen_kernel,
        out_shape=out_shapes,
        grid_spec=grid_spec,
        compiler_params=pltpu.CompilerParams(
            dimension_semantics=("arbitrary",)),
    )(tok_flat, params["emb"],
      wih0, whh0, b0,
      wih1, whh1, b1,
      params["wfc"], params["bfc"],
      h0p, c0p)

    # slice the real batch rows back out (padded rows are discarded)
    return logits_p[:B], (hn_p[:, :B], cn_p[:, :B])


def make_params(key, vocab_size, embed_dim, hidden_dim):
    ks = jax.random.split(key, 9)
    scale = 0.1
    emb = scale * jax.random.normal(ks[0], (vocab_size + 1, embed_dim), jnp.float32)
    emb = emb.at[vocab_size].set(0.0)  # padding_idx row = 0
    params = {
        "emb": emb,
        # layer 0: input_size = embed_dim  (PyTorch stores (4H, in); this is the transposed layout)
        "wih0": scale * jax.random.normal(ks[1], (embed_dim, 4 * hidden_dim), jnp.float32),
        "whh0": scale * jax.random.normal(ks[2], (hidden_dim, 4 * hidden_dim), jnp.float32),
        "b0":   scale * jax.random.normal(ks[3], (1, 4 * hidden_dim), jnp.float32),  # = b_ih + b_hh
        # layer 1: input_size = hidden_dim
        "wih1": scale * jax.random.normal(ks[4], (hidden_dim, 4 * hidden_dim), jnp.float32),
        "whh1": scale * jax.random.normal(ks[5], (hidden_dim, 4 * hidden_dim), jnp.float32),
        "b1":   scale * jax.random.normal(ks[6], (1, 4 * hidden_dim), jnp.float32),
        # fc: Linear(hidden_dim, vocab_size)
        "wfc":  scale * jax.random.normal(ks[7], (hidden_dim, vocab_size), jnp.float32),
        "bfc":  scale * jax.random.normal(ks[8], (1, vocab_size), jnp.float32),
    }
    return params


def reference_forward(x_tokens, params, hidden):
    """Pure-JAX reference with PyTorch LSTM semantics (i,f,g,o gate order, unfused weights, f32)."""
    h_init, c_init = hidden
    H = h_init.shape[-1]
    emb = jnp.take(params["emb"], x_tokens, axis=0)  # (B, T, E)
    B, T, _ = emb.shape
    h0, c0 = h_init[0], c_init[0]
    h1, c1 = h_init[1], c_init[1]

    def cell(x_t, h, c, wih, whh, b):
        g = x_t @ wih + h @ whh + b
        i = jax.nn.sigmoid(g[:, 0 * H:1 * H])
        f = jax.nn.sigmoid(g[:, 1 * H:2 * H])
        gg = jnp.tanh(g[:, 2 * H:3 * H])
        o = jax.nn.sigmoid(g[:, 3 * H:4 * H])
        c_new = f * c + i * gg
        return o * jnp.tanh(c_new), c_new

    for t in range(T):
        x_t = emb[:, t]
        h0, c0 = cell(x_t, h0, c0, params["wih0"], params["whh0"], params["b0"])
        h1, c1 = cell(h0, h1, c1, params["wih1"], params["whh1"], params["b1"])

    logits = h1 @ params["wfc"] + params["bfc"]
    h_n = jnp.stack([h0, h1], axis=0)
    c_n = jnp.stack([c0, c1], axis=0)
    return logits, (h_n, c_n)


if __name__ == "__main__":
    vocab_size = 16
    embed_dim = 32
    hidden_dim = HIDDEN_DIM  # 64
    batch = 2
    seq = 8

    key = jax.random.PRNGKey(0)
    k_param, k_tok = jax.random.split(key)
    params = make_params(k_param, vocab_size, embed_dim, hidden_dim)

    x_tokens = jax.random.randint(k_tok, (batch, seq), 0, vocab_size + 1, dtype=jnp.int32)
    # init_hidden(batch): zeros of shape (2, B, HIDDEN_DIM)
    hidden = (jnp.zeros((2, batch, hidden_dim), jnp.float32),
              jnp.zeros((2, batch, hidden_dim), jnp.float32))

    fwd = jax.jit(name_generator_forward)
    logits, (h_n, c_n) = fwd(x_tokens, params, hidden)
    jax.block_until_ready((logits, h_n, c_n))

    ref_logits, (ref_h, ref_c) = reference_forward(x_tokens, params, hidden)
    # tolerance loosened vs. pure-f32: the recurrent matmuls feed the MXU with bf16 operands
    # (f32 accumulation); observed error is ~1e-3 over 8 steps at these scales.
    np.testing.assert_allclose(np.asarray(logits), np.asarray(ref_logits), atol=1e-2, rtol=1e-2)
    np.testing.assert_allclose(np.asarray(h_n), np.asarray(ref_h), atol=1e-2, rtol=1e-2)
    np.testing.assert_allclose(np.asarray(c_n), np.asarray(ref_c), atol=1e-2, rtol=1e-2)

    print("KERNEL_OK")
</pallas_src>

<mosaic_0001>
module attributes {stable_mosaic.version = 11 : i64} {
  func.func @_namegen_kernel(%arg0: i32, %arg1: memref<64x1xi32, #tpu.memory_space<vmem>>, %arg2: memref<17x32xf32, #tpu.memory_space<vmem>>, %arg3: memref<32x256xf32, #tpu.memory_space<vmem>>, %arg4: memref<64x256xf32, #tpu.memory_space<vmem>>, %arg5: memref<1x256xf32, #tpu.memory_space<vmem>>, %arg6: memref<64x256xf32, #tpu.memory_space<vmem>>, %arg7: memref<64x256xf32, #tpu.memory_space<vmem>>, %arg8: memref<1x256xf32, #tpu.memory_space<vmem>>, %arg9: memref<64x16xf32, #tpu.memory_space<vmem>>, %arg10: memref<1x16xf32, #tpu.memory_space<vmem>>, %arg11: memref<2x8x64xf32, #tpu.memory_space<vmem>>, %arg12: memref<2x8x64xf32, #tpu.memory_space<vmem>>, %arg13: memref<8x16xf32, #tpu.memory_space<vmem>>, %arg14: memref<2x8x64xf32, #tpu.memory_space<vmem>>, %arg15: memref<2x8x64xf32, #tpu.memory_space<vmem>>) attributes {dimension_semantics = [#tpu.dimension_semantics<arbitrary>], iteration_bounds = array<i64: 1>, scalar_prefetch = 0 : i64, scratch_operands = 0 : i64, tpu.core_type = #tpu.core_type<tc>, window_params = [{pipeline_mode = #tpu.pipeline_mode<synchronous>, transform_indices = @transform_0, window_bounds = array<i64: 64, 1>}, {pipeline_mode = #tpu.pipeline_mode<synchronous>, transform_indices = @transform_1, window_bounds = array<i64: 17, 32>}, {pipeline_mode = #tpu.pipeline_mode<synchronous>, transform_indices = @transform_2, window_bounds = array<i64: 32, 256>}, {pipeline_mode = #tpu.pipeline_mode<synchronous>, transform_indices = @transform_3, window_bounds = array<i64: 64, 256>}, {pipeline_mode = #tpu.pipeline_mode<synchronous>, transform_indices = @transform_4, window_bounds = array<i64: 1, 256>}, {pipeline_mode = #tpu.pipeline_mode<synchronous>, transform_indices = @transform_5, window_bounds = array<i64: 64, 256>}, {pipeline_mode = #tpu.pipeline_mode<synchronous>, transform_indices = @transform_6, window_bounds = array<i64: 64, 256>}, {pipeline_mode = #tpu.pipeline_mode<synchronous>, transform_indices = @transform_7, window_bounds = array<i64: 1, 256>}, {pipeline_mode = #tpu.pipeline_mode<synchronous>, transform_indices = @transform_8, window_bounds = array<i64: 64, 16>}, {pipeline_mode = #tpu.pipeline_mode<synchronous>, transform_indices = @transform_9, window_bounds = array<i64: 1, 16>}, {pipeline_mode = #tpu.pipeline_mode<synchronous>, transform_indices = @transform_10, window_bounds = array<i64: 2, 8, 64>}, {pipeline_mode = #tpu.pipeline_mode<synchronous>, transform_indices = @transform_11, window_bounds = array<i64: 2, 8, 64>}, {pipeline_mode = #tpu.pipeline_mode<synchronous>, transform_indices = @transform_12, window_bounds = array<i64: 8, 16>}, {pipeline_mode = #tpu.pipeline_mode<synchronous>, transform_indices = @transform_13, window_bounds = array<i64: 2, 8, 64>}, {pipeline_mode = #tpu.pipeline_mode<synchronous>, transform_indices = @transform_14, window_bounds = array<i64: 2, 8, 64>}]} {
    %c0 = arith.constant 0 : index
    %c0_0 = arith.constant 0 : index
    %0 = vector.load %arg1[%c0, %c0_0] : memref<64x1xi32, #tpu.memory_space<vmem>>, vector<64x1xi32>
    %1 = tpu.iota {dimensions = array<i32: 1>} : vector<64x17xi32>
    %2 = vector.broadcast %0 : vector<64x1xi32> to vector<64x17xi32>
    %3 = arith.cmpi eq, %2, %1 : vector<64x17xi32>
    %4 = arith.extui %3 : vector<64x17xi1> to vector<64x17xi32>
    %5 = arith.sitofp %4 : vector<64x17xi32> to vector<64x17xf32>
    %c0_1 = arith.constant 0 : index
    %c0_2 = arith.constant 0 : index
    %6 = vector.load %arg2[%c0_1, %c0_2] : memref<17x32xf32, #tpu.memory_space<vmem>>, vector<17x32xf32>
    %c0_3 = arith.constant 0 : index
    %c0_4 = arith.constant 0 : index
    %7 = vector.load %arg3[%c0_3, %c0_4] : memref<32x256xf32, #tpu.memory_space<vmem>>, vector<32x256xf32>
    %cst = arith.constant dense<0.000000e+00> : vector<17x256xf32>
    %8 = tpu.matmul %6, %7, %cst {dimension_numbers = #tpu.dot_dimension_numbers<[1], [0], [0], [1], [0, 0, 1, 1], [], []>} : vector<17x32xf32>, vector<32x256xf32>, vector<17x256xf32> -> vector<17x256xf32>
    %cst_5 = arith.constant dense<0.000000e+00> : vector<64x256xf32>
    %9 = tpu.matmul %5, %8, %cst_5 {dimension_numbers = #tpu.dot_dimension_numbers<[1], [0], [0], [1], [0, 0, 1, 1], [], []>} : vector<64x17xf32>, vector<17x256xf32>, vector<64x256xf32> -> vector<64x256xf32>
    %c0_6 = arith.constant 0 : index
    %c0_7 = arith.constant 0 : index
    %10 = vector.load %arg5[%c0_6, %c0_7] : memref<1x256xf32, #tpu.memory_space<vmem>>, vector<1x256xf32>
    %11 = vector.broadcast %10 : vector<1x256xf32> to vector<64x256xf32>
    %12 = arith.addf %9, %11 : vector<64x256xf32>
    %c0_8 = arith.constant 0 : index
    %c0_9 = arith.constant 0 : index
    %13 = vector.load %arg4[%c0_8, %c0_9] : memref<64x256xf32, #tpu.memory_space<vmem>>, vector<64x256xf32>
    %14 = arith.truncf %13 : vector<64x256xf32> to vector<64x256xbf16>
    %c0_10 = arith.constant 0 : index
    %c0_11 = arith.constant 0 : index
    %15 = vector.load %arg6[%c0_10, %c0_11] : memref<64x256xf32, #tpu.memory_space<vmem>>, vector<64x256xf32>
    %16 = arith.truncf %15 : vector<64x256xf32> to vector<64x256xbf16>
    %c0_12 = arith.constant 0 : index
    %c0_13 = arith.constant 0 : index
    %17 = vector.load %arg7[%c0_12, %c0_13] : memref<64x256xf32, #tpu.memory_space<vmem>>, vector<64x256xf32>
    %18 = arith.truncf %17 : vector<64x256xf32> to vector<64x256xbf16>
    %c0_14 = arith.constant 0 : index
    %c0_15 = arith.constant 0 : index
    %19 = vector.load %arg8[%c0_14, %c0_15] : memref<1x256xf32, #tpu.memory_space<vmem>>, vector<1x256xf32>
    %20 = vector.shape_cast %19 : vector<1x256xf32> to vector<1x256xf32>
    %21 = vector.broadcast %20 : vector<1x256xf32> to vector<8x256xf32>
    %22 = tpu.iota {dimensions = array<i32: 1>} : vector<8x128xi32>
    %c64_i32 = arith.constant 64 : i32
    %23 = vector.broadcast %c64_i32 : i32 to vector<8x128xi32>
    %24 = arith.cmpi slt, %22, %23 : vector<8x128xi32>
    %c0_16 = arith.constant 0 : index
    %c0_17 = arith.constant 0 : index
    %c0_18 = arith.constant 0 : index
    %25 = vector.load %arg11[%c0_16, %c0_17, %c0_18] : memref<2x8x64xf32, #tpu.memory_space<vmem>>, vector<1x8x64xf32>
    %26 = vector.shape_cast %25 : vector<1x8x64xf32> to vector<8x64xf32>
    %c1 = arith.constant 1 : index
    %c0_19 = arith.constant 0 : index
    %c0_20 = arith.constant 0 : index
    %27 = vector.load %arg11[%c1, %c0_19, %c0_20] : memref<2x8x64xf32, #tpu.memory_space<vmem>>, vector<1x8x64xf32>
    %28 = vector.shape_cast %27 : vector<1x8x64xf32> to vector<8x64xf32>
    %c0_21 = arith.constant 0 : index
    %c0_22 = arith.constant 0 : index
    %c0_23 = arith.constant 0 : index
    %29 = vector.load %arg12[%c0_21, %c0_22, %c0_23] : memref<2x8x64xf32, #tpu.memory_space<vmem>>, vector<1x8x64xf32>
    %30 = vector.shape_cast %29 : vector<1x8x64xf32> to vector<8x64xf32>
    %c1_24 = arith.constant 1 : index
    %c0_25 = arith.constant 0 : index
    %c0_26 = arith.constant 0 : index
    %31 = vector.load %arg12[%c1_24, %c0_25, %c0_26] : memref<2x8x64xf32, #tpu.memory_space<vmem>>, vector<1x8x64xf32>
    %32 = vector.shape_cast %31 : vector<1x8x64xf32> to vector<8x64xf32>
    %33 = tpu.concatenate %30, %30 in 1 : vector<8x64xf32>, vector<8x64xf32> -> vector<8x128xf32>
    %34 = tpu.concatenate %32, %32 in 1 : vector<8x64xf32>, vector<8x64xf32> -> vector<8x128xf32>
    %35 = vector.extract_strided_slice %12 {offsets = [0, 0], sizes = [8, 256], strides = [1, 1]} : vector<64x256xf32> to vector<8x256xf32>
    %36 = arith.truncf %28 : vector<8x64xf32> to vector<8x64xbf16>
    %cst_27 = arith.constant dense<0.000000e+00> : vector<8x256xf32>
    %37 = tpu.matmul %36, %18, %cst_27 {dimension_numbers = #tpu.dot_dimension_numbers<[1], [0], [0], [1], [0, 0, 1, 1], [], []>} : vector<8x64xbf16>, vector<64x256xbf16>, vector<8x256xf32> -> vector<8x256xf32>
    %38 = arith.addf %37, %21 : vector<8x256xf32>
    %39 = arith.truncf %26 : vector<8x64xf32> to vector<8x64xbf16>
    %cst_28 = arith.constant dense<0.000000e+00> : vector<8x256xf32>
    %40 = tpu.matmul %39, %14, %cst_28 {dimension_numbers = #tpu.dot_dimension_numbers<[1], [0], [0], [1], [0, 0, 1, 1], [], []>} : vector<8x64xbf16>, vector<64x256xbf16>, vector<8x256xf32> -> vector<8x256xf32>
    %41 = arith.addf %40, %35 : vector<8x256xf32>
    %42 = vector.extract_strided_slice %41 {offsets = [0, 0], sizes = [8, 128], strides = [1, 1]} : vector<8x256xf32> to vector<8x128xf32>
    %43 = vector.extract_strided_slice %41 {offsets = [0, 128], sizes = [8, 128], strides = [1, 1]} : vector<8x256xf32> to vector<8x128xf32>
    %44 = arith.negf %42 : vector<8x128xf32>
    %45 = math.exp %44 : vector<8x128xf32>
    %cst_29 = arith.constant 1.000000e+00 : f32
    %46 = vector.broadcast %cst_29 : f32 to vector<8x128xf32>
    %47 = arith.addf %46, %45 : vector<8x128xf32>
    %48 = arith.divf %46, %47 : vector<8x128xf32>
    %49 = arith.negf %43 : vector<8x128xf32>
    %50 = math.exp %49 : vector<8x128xf32>
    %cst_30 = arith.constant 1.000000e+00 : f32
    %51 = vector.broadcast %cst_30 : f32 to vector<8x128xf32>
    %52 = arith.addf %51, %50 : vector<8x128xf32>
    %53 = arith.divf %51, %52 : vector<8x128xf32>
    %54 = math.tanh %43 : vector<8x128xf32>
    %55 = arith.select %24, %53, %54 : vector<8x128xi1>, vector<8x128xf32>
    %56 = arith.select %24, %33, %55 : vector<8x128xi1>, vector<8x128xf32>
    %57 = arith.mulf %48, %56 : vector<8x128xf32>
    %c64_i32_31 = arith.constant 64 : i32
    %58 = tpu.dynamic_rotate %57 by %c64_i32_31 dim 1 : vector<8x128xf32>, i32 -> vector<8x128xf32>
    %59 = arith.addf %57, %58 : vector<8x128xf32>
    %60 = math.tanh %59 : vector<8x128xf32>
    %61 = arith.mulf %55, %60 : vector<8x128xf32>
    %62 = vector.extract_strided_slice %61 {offsets = [0, 0], sizes = [8, 64], strides = [1, 1]} : vector<8x128xf32> to vector<8x64xf32>
    %63 = arith.truncf %62 : vector<8x64xf32> to vector<8x64xbf16>
    %cst_32 = arith.constant dense<0.000000e+00> : vector<8x256xf32>
    %64 = tpu.matmul %63, %16, %cst_32 {dimension_numbers = #tpu.dot_dimension_numbers<[1], [0], [0], [1], [0, 0, 1, 1], [], []>} : vector<8x64xbf16>, vector<64x256xbf16>, vector<8x256xf32> -> vector<8x256xf32>
    %65 = arith.addf %64, %38 : vector<8x256xf32>
    %66 = vector.extract_strided_slice %65 {offsets = [0, 0], sizes = [8, 128], strides = [1, 1]} : vector<8x256xf32> to vector<8x128xf32>
    %67 = vector.extract_strided_slice %65 {offsets = [0, 128], sizes = [8, 128], strides = [1, 1]} : vector<8x256xf32> to vector<8x128xf32>
    %68 = arith.negf %66 : vector<8x128xf32>
    %69 = math.exp %68 : vector<8x128xf32>
    %cst_33 = arith.constant 1.000000e+00 : f32
    %70 = vector.broadcast %cst_33 : f32 to vector<8x128xf32>
    %71 = arith.addf %70, %69 : vector<8x128xf32>
    %72 = arith.divf %70, %71 : vector<8x128xf32>
    %73 = arith.negf %67 : vector<8x128xf32>
    %74 = math.exp %73 : vector<8x128xf32>
    %cst_34 = arith.constant 1.000000e+00 : f32
    %75 = vector.broadcast %cst_34 : f32 to vector<8x128xf32>
    %76 = arith.addf %75, %74 : vector<8x128xf32>
    %77 = arith.divf %75, %76 : vector<8x128xf32>
    %78 = math.tanh %67 : vector<8x128xf32>
    %79 = arith.select %24, %77, %78 : vector<8x128xi1>, vector<8x128xf32>
    %80 = arith.select %24, %34, %79 : vector<8x128xi1>, vector<8x128xf32>
    %81 = arith.mulf %72, %80 : vector<8x128xf32>
    %c64_i32_35 = arith.constant 64 : i32
    %82 = tpu.dynamic_rotate %81 by %c64_i32_35 dim 1 : vector<8x128xf32>, i32 -> vector<8x128xf32>
    %83 = arith.addf %81, %82 : vector<8x128xf32>
    %84 = math.tanh %83 : vector<8x128xf32>
    %85 = arith.mulf %79, %84 : vector<8x128xf32>
    %86 = vector.extract_strided_slice %85 {offsets = [0, 0], sizes = [8, 64], strides = [1, 1]} : vector<8x128xf32> to vector<8x64xf32>
    %87 = vector.extract_strided_slice %12 {offsets = [8, 0], sizes = [8, 256], strides = [1, 1]} : vector<64x256xf32> to vector<8x256xf32>
    %88 = arith.truncf %86 : vector<8x64xf32> to vector<8x64xbf16>
    %cst_36 = arith.constant dense<0.000000e+00> : vector<8x256xf32>
    %89 = tpu.matmul %88, %18, %cst_36 {dimension_numbers = #tpu.dot_dimension_numbers<[1], [0], [0], [1], [0, 0, 1, 1], [], []>} : vector<8x64xbf16>, vector<64x256xbf16>, vector<8x256xf32> -> vector<8x256xf32>
    %90 = arith.addf %89, %21 : vector<8x256xf32>
    %91 = arith.truncf %62 : vector<8x64xf32> to vector<8x64xbf16>
    %cst_37 = arith.constant dense<0.000000e+00> : vector<8x256xf32>
    %92 = tpu.matmul %91, %14, %cst_37 {dimension_numbers = #tpu.dot_dimension_numbers<[1], [0], [0], [1], [0, 0, 1, 1], [], []>} : vector<8x64xbf16>, vector<64x256xbf16>, vector<8x256xf32> -> vector<8x256xf32>
    %93 = arith.addf %92, %87 : vector<8x256xf32>
    %94 = vector.extract_strided_slice %93 {offsets = [0, 0], sizes = [8, 128], strides = [1, 1]} : vector<8x256xf32> to vector<8x128xf32>
    %95 = vector.extract_strided_slice %93 {offsets = [0, 128], sizes = [8, 128], strides = [1, 1]} : vector<8x256xf32> to vector<8x128xf32>
    %96 = arith.negf %94 : vector<8x128xf32>
    %97 = math.exp %96 : vector<8x128xf32>
    %cst_38 = arith.constant 1.000000e+00 : f32
    %98 = vector.broadcast %cst_38 : f32 to vector<8x128xf32>
    %99 = arith.addf %98, %97 : vector<8x128xf32>
    %100 = arith.divf %98, %99 : vector<8x128xf32>
    %101 = arith.negf %95 : vector<8x128xf32>
    %102 = math.exp %101 : vector<8x128xf32>
    %cst_39 = arith.constant 1.000000e+00 : f32
    %103 = vector.broadcast %cst_39 : f32 to vector<8x128xf32>
    %104 = arith.addf %103, %102 : vector<8x128xf32>
    %105 = arith.divf %103, %104 : vector<8x128xf32>
    %106 = math.tanh %95 : vector<8x128xf32>
    %107 = arith.select %24, %105, %106 : vector<8x128xi1>, vector<8x128xf32>
    %108 = arith.select %24, %59, %107 : vector<8x128xi1>, vector<8x128xf32>
    %109 = arith.mulf %100, %108 : vector<8x128xf32>
    %c64_i32_40 = arith.constant 64 : i32
    %110 = tpu.dynamic_rotate %109 by %c64_i32_40 dim 1 : vector<8x128xf32>, i32 -> vector<8x128xf32>
    %111 = arith.addf %109, %110 : vector<8x128xf32>
    %112 = math.tanh %111 : vector<8x128xf32>
    %113 = arith.mulf %107, %112 : vector<8x128xf32>
    %114 = vector.extract_strided_slice %113 {offsets = [0, 0], sizes = [8, 64], strides = [1, 1]} : vector<8x128xf32> to vector<8x64xf32>
    %115 = arith.truncf %114 : vector<8x64xf32> to vector<8x64xbf16>
    %cst_41 = arith.constant dense<0.000000e+00> : vector<8x256xf32>
    %116 = tpu.matmul %115, %16, %cst_41 {dimension_numbers = #tpu.dot_dimension_numbers<[1], [0], [0], [1], [0, 0, 1, 1], [], []>} : vector<8x64xbf16>, vector<64x256xbf16>, vector<8x256xf32> -> vector<8x256xf32>
    %117 = arith.addf %116, %90 : vector<8x256xf32>
    %118 = vector.extract_strided_slice %117 {offsets = [0, 0], sizes = [8, 128], strides = [1, 1]} : vector<8x256xf32> to vector<8x128xf32>
    %119 = vector.extract_strided_slice %117 {offsets = [0, 128], sizes = [8, 128], strides = [1, 1]} : vector<8x256xf32> to vector<8x128xf32>
    %120 = arith.negf %118 : vector<8x128xf32>
    %121 = math.exp %120 : vector<8x128xf32>
    %cst_42 = arith.constant 1.000000e+00 : f32
    %122 = vector.broadcast %cst_42 : f32 to vector<8x128xf32>
    %123 = arith.addf %122, %121 : vector<8x128xf32>
    %124 = arith.divf %122, %123 : vector<8x128xf32>
    %125 = arith.negf %119 : vector<8x128xf32>
    %126 = math.exp %125 : vector<8x128xf32>
    %cst_43 = arith.constant 1.000000e+00 : f32
    %127 = vector.broadcast %cst_43 : f32 to vector<8x128xf32>
    %128 = arith.addf %127, %126 : vector<8x128xf32>
    %129 = arith.divf %127, %128 : vector<8x128xf32>
    %130 = math.tanh %119 : vector<8x128xf32>
    %131 = arith.select %24, %129, %130 : vector<8x128xi1>, vector<8x128xf32>
    %132 = arith.select %24, %83, %131 : vector<8x128xi1>, vector<8x128xf32>
    %133 = arith.mulf %124, %132 : vector<8x128xf32>
    %c64_i32_44 = arith.constant 64 : i32
    %134 = tpu.dynamic_rotate %133 by %c64_i32_44 dim 1 : vector<8x128xf32>, i32 -> vector<8x128xf32>
    %135 = arith.addf %133, %134 : vector<8x128xf32>
    %136 = math.tanh %135 : vector<8x128xf32>
    %137 = arith.mulf %131, %136 : vector<8x128xf32>
    %138 = vector.extract_strided_slice %137 {offsets = [0, 0], sizes = [8, 64], strides = [1, 1]} : vector<8x128xf32> to vector<8x64xf32>
    %139 = vector.extract_strided_slice %12 {offsets = [16, 0], sizes = [8, 256], strides = [1, 1]} : vector<64x256xf32> to vector<8x256xf32>
    %140 = arith.truncf %138 : vector<8x64xf32> to vector<8x64xbf16>
    %cst_45 = arith.constant dense<0.000000e+00> : vector<8x256xf32>
    %141 = tpu.matmul %140, %18, %cst_45 {dimension_numbers = #tpu.dot_dimension_numbers<[1], [0], [0], [1], [0, 0, 1, 1], [], []>} : vector<8x64xbf16>, vector<64x256xbf16>, vector<8x256xf32> -> vector<8x256xf32>
    %142 = arith.addf %141, %21 : vector<8x256xf32>
    %143 = arith.truncf %114 : vector<8x64xf32> to vector<8x64xbf16>
    %cst_46 = arith.constant dense<0.000000e+00> : vector<8x256xf32>
    %144 = tpu.matmul %143, %14, %cst_46 {dimension_numbers = #tpu.dot_dimension_numbers<[1], [0], [0], [1], [0, 0, 1, 1], [], []>} : vector<8x64xbf16>, vector<64x256xbf16>, vector<8x256xf32> -> vector<8x256xf32>
    %145 = arith.addf %144, %139 : vector<8x256xf32>
    %146 = vector.extract_strided_slice %145 {offsets = [0, 0], sizes = [8, 128], strides = [1, 1]} : vector<8x256xf32> to vector<8x128xf32>
    %147 = vector.extract_strided_slice %145 {offsets = [0, 128], sizes = [8, 128], strides = [1, 1]} : vector<8x256xf32> to vector<8x128xf32>
    %148 = arith.negf %146 : vector<8x128xf32>
    %149 = math.exp %148 : vector<8x128xf32>
    %cst_47 = arith.constant 1.000000e+00 : f32
    %150 = vector.broadcast %cst_47 : f32 to vector<8x128xf32>
    %151 = arith.addf %150, %149 : vector<8x128xf32>
    %152 = arith.divf %150, %151 : vector<8x128xf32>
    %153 = arith.negf %147 : vector<8x128xf32>
    %154 = math.exp %153 : vector<8x128xf32>
    %cst_48 = arith.constant 1.000000e+00 : f32
    %155 = vector.broadcast %cst_48 : f32 to vector<8x128xf32>
    %156 = arith.addf %155, %154 : vector<8x128xf32>
    %157 = arith.divf %155, %156 : vector<8x128xf32>
    %158 = math.tanh %147 : vector<8x128xf32>
    %159 = arith.select %24, %157, %158 : vector<8x128xi1>, vector<8x128xf32>
    %160 = arith.select %24, %111, %159 : vector<8x128xi1>, vector<8x128xf32>
    %161 = arith.mulf %152, %160 : vector<8x128xf32>
    %c64_i32_49 = arith.constant 64 : i32
    %162 = tpu.dynamic_rotate %161 by %c64_i32_49 dim 1 : vector<8x128xf32>, i32 -> vector<8x128xf32>
    %163 = arith.addf %161, %162 : vector<8x128xf32>
    %164 = math.tanh %163 : vector<8x128xf32>
    %165 = arith.mulf %159, %164 : vector<8x128xf32>
    %166 = vector.extract_strided_slice %165 {offsets = [0, 0], sizes = [8, 64], strides = [1, 1]} : vector<8x128xf32> to vector<8x64xf32>
    %167 = arith.truncf %166 : vector<8x64xf32> to vector<8x64xbf16>
    %cst_50 = arith.constant dense<0.000000e+00> : vector<8x256xf32>
    %168 = tpu.matmul %167, %16, %cst_50 {dimension_numbers = #tpu.dot_dimension_numbers<[1], [0], [0], [1], [0, 0, 1, 1], [], []>} : vector<8x64xbf16>, vector<64x256xbf16>, vector<8x256xf32> -> vector<8x256xf32>
    %169 = arith.addf %168, %142 : vector<8x256xf32>
    %170 = vector.extract_strided_slice %169 {offsets = [0, 0], sizes = [8, 128], strides = [1, 1]} : vector<8x256xf32> to vector<8x128xf32>
    %171 = vector.extract_strided_slice %169 {offsets = [0, 128], sizes = [8, 128], strides = [1, 1]} : vector<8x256xf32> to vector<8x128xf32>
    %172 = arith.negf %170 : vector<8x128xf32>
    %173 = math.exp %172 : vector<8x128xf32>
    %cst_51 = arith.constant 1.000000e+00 : f32
    %174 = vector.broadcast %cst_51 : f32 to vector<8x128xf32>
    %175 = arith.addf %174, %173 : vector<8x128xf32>
    %176 = arith.divf %174, %175 : vector<8x128xf32>
    %177 = arith.negf %171 : vector<8x128xf32>
    %178 = math.exp %177 : vector<8x128xf32>
    %cst_52 = arith.constant 1.000000e+00 : f32
    %179 = vector.broadcast %cst_52 : f32 to vector<8x128xf32>
    %180 = arith.addf %179, %178 : vector<8x128xf32>
    %181 = arith.divf %179, %180 : vector<8x128xf32>
    %182 = math.tanh %171 : vector<8x128xf32>
    %183 = arith.select %24, %181, %182 : vector<8x128xi1>, vector<8x128xf32>
    %184 = arith.select %24, %135, %183 : vector<8x128xi1>, vector<8x128xf32>
    %185 = arith.mulf %176, %184 : vector<8x128xf32>
    %c64_i32_53 = arith.constant 64 : i32
    %186 = tpu.dynamic_rotate %185 by %c64_i32_53 dim 1 : vector<8x128xf32>, i32 -> vector<8x128xf32>
    %187 = arith.addf %185, %186 : vector<8x128xf32>
    %188 = math.tanh %187 : vector<8x128xf32>
    %189 = arith.mulf %183, %188 : vector<8x128xf32>
    %190 = vector.extract_strided_slice %189 {offsets = [0, 0], sizes = [8, 64], strides = [1, 1]} : vector<8x128xf32> to vector<8x64xf32>
    %191 = vector.extract_strided_slice %12 {offsets = [24, 0], sizes = [8, 256], strides = [1, 1]} : vector<64x256xf32> to vector<8x256xf32>
    %192 = arith.truncf %190 : vector<8x64xf32> to vector<8x64xbf16>
    %cst_54 = arith.constant dense<0.000000e+00> : vector<8x256xf32>
    %193 = tpu.matmul %192, %18, %cst_54 {dimension_numbers = #tpu.dot_dimension_numbers<[1], [0], [0], [1], [0, 0, 1, 1], [], []>} : vector<8x64xbf16>, vector<64x256xbf16>, vector<8x256xf32> -> vector<8x256xf32>
    %194 = arith.addf %193, %21 : vector<8x256xf32>
    %195 = arith.truncf %166 : vector<8x64xf32> to vector<8x64xbf16>
    %cst_55 = arith.constant dense<0.000000e+00> : vector<8x256xf32>
    %196 = tpu.matmul %195, %14, %cst_55 {dimension_numbers = #tpu.dot_dimension_numbers<[1], [0], [0], [1], [0, 0, 1, 1], [], []>} : vector<8x64xbf16>, vector<64x256xbf16>, vector<8x256xf32> -> vector<8x256xf32>
    %197 = arith.addf %196, %191 : vector<8x256xf32>
    %198 = vector.extract_strided_slice %197 {offsets = [0, 0], sizes = [8, 128], strides = [1, 1]} : vector<8x256xf32> to vector<8x128xf32>
    %199 = vector.extract_strided_slice %197 {offsets = [0, 128], sizes = [8, 128], strides = [1, 1]} : vector<8x256xf32> to vector<8x128xf32>
    %200 = arith.negf %198 : vector<8x128xf32>
    %201 = math.exp %200 : vector<8x128xf32>
    %cst_56 = arith.constant 1.000000e+00 : f32
    %202 = vector.broadcast %cst_56 : f32 to vector<8x128xf32>
    %203 = arith.addf %202, %201 : vector<8x128xf32>
    %204 = arith.divf %202, %203 : vector<8x128xf32>
    %205 = arith.negf %199 : vector<8x128xf32>
    %206 = math.exp %205 : vector<8x128xf32>
    %cst_57 = arith.constant 1.000000e+00 : f32
    %207 = vector.broadcast %cst_57 : f32 to vector<8x128xf32>
    %208 = arith.addf %207, %206 : vector<8x128xf32>
    %209 = arith.divf %207, %208 : vector<8x128xf32>
    %210 = math.tanh %199 : vector<8x128xf32>
    %211 = arith.select %24, %209, %210 : vector<8x128xi1>, vector<8x128xf32>
    %212 = arith.select %24, %163, %211 : vector<8x128xi1>, vector<8x128xf32>
    %213 = arith.mulf %204, %212 : vector<8x128xf32>
    %c64_i32_58 = arith.constant 64 : i32
    %214 = tpu.dynamic_rotate %213 by %c64_i32_58 dim 1 : vector<8x128xf32>, i32 -> vector<8x128xf32>
    %215 = arith.addf %213, %214 : vector<8x128xf32>
    %216 = math.tanh %215 : vector<8x128xf32>
    %217 = arith.mulf %211, %216 : vector<8x128xf32>
    %218 = vector.extract_strided_slice %217 {offsets = [0, 0], sizes = [8, 64], strides = [1, 1]} : vector<8x128xf32> to vector<8x64xf32>
    %219 = arith.truncf %218 : vector<8x64xf32> to vector<8x64xbf16>
    %cst_59 = arith.constant dense<0.000000e+00> : vector<8x256xf32>
    %220 = tpu.matmul %219, %16, %cst_59 {dimension_numbers = #tpu.dot_dimension_numbers<[1], [0], [0], [1], [0, 0, 1, 1], [], []>} : vector<8x64xbf16>, vector<64x256xbf16>, vector<8x256xf32> -> vector<8x256xf32>
    %221 = arith.addf %220, %194 : vector<8x256xf32>
    %222 = vector.extract_strided_slice %221 {offsets = [0, 0], sizes = [8, 128], strides = [1, 1]} : vector<8x256xf32> to vector<8x128xf32>
    %223 = vector.extract_strided_slice %221 {offsets = [0, 128], sizes = [8, 128], strides = [1, 1]} : vector<8x256xf32> to vector<8x128xf32>
    %224 = arith.negf %222 : vector<8x128xf32>
    %225 = math.exp %224 : vector<8x128xf32>
    %cst_60 = arith.constant 1.000000e+00 : f32
    %226 = vector.broadcast %cst_60 : f32 to vector<8x128xf32>
    %227 = arith.addf %226, %225 : vector<8x128xf32>
    %228 = arith.divf %226, %227 : vector<8x128xf32>
    %229 = arith.negf %223 : vector<8x128xf32>
    %230 = math.exp %229 : vector<8x128xf32>
    %cst_61 = arith.constant 1.000000e+00 : f32
    %231 = vector.broadcast %cst_61 : f32 to vector<8x128xf32>
    %232 = arith.addf %231, %230 : vector<8x128xf32>
    %233 = arith.divf %231, %232 : vector<8x128xf32>
    %234 = math.tanh %223 : vector<8x128xf32>
    %235 = arith.select %24, %233, %234 : vector<8x128xi1>, vector<8x128xf32>
    %236 = arith.select %24, %187, %235 : vector<8x128xi1>, vector<8x128xf32>
    %237 = arith.mulf %228, %236 : vector<8x128xf32>
    %c64_i32_62 = arith.constant 64 : i32
    %238 = tpu.dynamic_rotate %237 by %c64_i32_62 dim 1 : vector<8x128xf32>, i32 -> vector<8x128xf32>
    %239 = arith.addf %237, %238 : vector<8x128xf32>
    %240 = math.tanh %239 : vector<8x128xf32>
    %241 = arith.mulf %235, %240 : vector<8x128xf32>
    %242 = vector.extract_strided_slice %241 {offsets = [0, 0], sizes = [8, 64], strides = [1, 1]} : vector<8x128xf32> to vector<8x64xf32>
    %243 = vector.extract_strided_slice %12 {offsets = [32, 0], sizes = [8, 256], strides = [1, 1]} : vector<64x256xf32> to vector<8x256xf32>
    %244 = arith.truncf %242 : vector<8x64xf32> to vector<8x64xbf16>
    %cst_63 = arith.constant dense<0.000000e+00> : vector<8x256xf32>
    %245 = tpu.matmul %244, %18, %cst_63 {dimension_numbers = #tpu.dot_dimension_numbers<[1], [0], [0], [1], [0, 0, 1, 1], [], []>} : vector<8x64xbf16>, vector<64x256xbf16>, vector<8x256xf32> -> vector<8x256xf32>
    %246 = arith.addf %245, %21 : vector<8x256xf32>
    %247 = arith.truncf %218 : vector<8x64xf32> to vector<8x64xbf16>
    %cst_64 = arith.constant dense<0.000000e+00> : vector<8x256xf32>
    %248 = tpu.matmul %247, %14, %cst_64 {dimension_numbers = #tpu.dot_dimension_numbers<[1], [0], [0], [1], [0, 0, 1, 1], [], []>} : vector<8x64xbf16>, vector<64x256xbf16>, vector<8x256xf32> -> vector<8x256xf32>
    %249 = arith.addf %248, %243 : vector<8x256xf32>
    %250 = vector.extract_strided_slice %249 {offsets = [0, 0], sizes = [8, 128], strides = [1, 1]} : vector<8x256xf32> to vector<8x128xf32>
    %251 = vector.extract_strided_slice %249 {offsets = [0, 128], sizes = [8, 128], strides = [1, 1]} : vector<8x256xf32> to vector<8x128xf32>
    %252 = arith.negf %250 : vector<8x128xf32>
    %253 = math.exp %252 : vector<8x128xf32>
    %cst_65 = arith.constant 1.000000e+00 : f32
    %254 = vector.broadcast %cst_65 : f32 to vector<8x128xf32>
    %255 = arith.addf %254, %253 : vector<8x128xf32>
    %256 = arith.divf %254, %255 : vector<8x128xf32>
    %257 = arith.negf %251 : vector<8x128xf32>
    %258 = math.exp %257 : vector<8x128xf32>
    %cst_66 = arith.constant 1.000000e+00 : f32
    %259 = vector.broadcast %cst_66 : f32 to vector<8x128xf32>
    %260 = arith.addf %259, %258 : vector<8x128xf32>
    %261 = arith.divf %259, %260 : vector<8x128xf32>
    %262 = math.tanh %251 : vector<8x128xf32>
    %263 = arith.select %24, %261, %262 : vector<8x128xi1>, vector<8x128xf32>
    %264 = arith.select %24, %215, %263 : vector<8x128xi1>, vector<8x128xf32>
    %265 = arith.mulf %256, %264 : vector<8x128xf32>
    %c64_i32_67 = arith.constant 64 : i32
    %266 = tpu.dynamic_rotate %265 by %c64_i32_67 dim 1 : vector<8x128xf32>, i32 -> vector<8x128xf32>
    %267 = arith.addf %265, %266 : vector<8x128xf32>
    %268 = math.tanh %267 : vector<8x128xf32>
    %269 = arith.mulf %263, %268 : vector<8x128xf32>
    %270 = vector.extract_strided_slice %269 {offsets = [0, 0], sizes = [8, 64], strides = [1, 1]} : vector<8x128xf32> to vector<8x64xf32>
    %271 = arith.truncf %270 : vector<8x64xf32> to vector<8x64xbf16>
    %cst_68 = arith.constant dense<0.000000e+00> : vector<8x256xf32>
    %272 = tpu.matmul %271, %16, %cst_68 {dimension_numbers = #tpu.dot_dimension_numbers<[1], [0], [0], [1], [0, 0, 1, 1], [], []>} : vector<8x64xbf16>, vector<64x256xbf16>, vector<8x256xf32> -> vector<8x256xf32>
    %273 = arith.addf %272, %246 : vector<8x256xf32>
    %274 = vector.extract_strided_slice %273 {offsets = [0, 0], sizes = [8, 128], strides = [1, 1]} : vector<8x256xf32> to vector<8x128xf32>
    %275 = vector.extract_strided_slice %273 {offsets = [0, 128], sizes = [8, 128], strides = [1, 1]} : vector<8x256xf32> to vector<8x128xf32>
    %276 = arith.negf %274 : vector<8x128xf32>
    %277 = math.exp %276 : vector<8x128xf32>
    %cst_69 = arith.constant 1.000000e+00 : f32
    %278 = vector.broadcast %cst_69 : f32 to vector<8x128xf32>
    %279 = arith.addf %278, %277 : vector<8x128xf32>
    %280 = arith.divf %278, %279 : vector<8x128xf32>
    %281 = arith.negf %275 : vector<8x128xf32>
    %282 = math.exp %281 : vector<8x128xf32>
    %cst_70 = arith.constant 1.000000e+00 : f32
    %283 = vector.broadcast %cst_70 : f32 to vector<8x128xf32>
    %284 = arith.addf %283, %282 : vector<8x128xf32>
    %285 = arith.divf %283, %284 : vector<8x128xf32>
    %286 = math.tanh %275 : vector<8x128xf32>
    %287 = arith.select %24, %285, %286 : vector<8x128xi1>, vector<8x128xf32>
    %288 = arith.select %24, %239, %287 : vector<8x128xi1>, vector<8x128xf32>
    %289 = arith.mulf %280, %288 : vector<8x128xf32>
    %c64_i32_71 = arith.constant 64 : i32
    %290 = tpu.dynamic_rotate %289 by %c64_i32_71 dim 1 : vector<8x128xf32>, i32 -> vector<8x128xf32>
    %291 = arith.addf %289, %290 : vector<8x128xf32>
    %292 = math.tanh %291 : vector<8x128xf32>
    %293 = arith.mulf %287, %292 : vector<8x128xf32>
    %294 = vector.extract_strided_slice %293 {offsets = [0, 0], sizes = [8, 64], strides = [1, 1]} : vector<8x128xf32> to vector<8x64xf32>
    %295 = vector.extract_strided_slice %12 {offsets = [40, 0], sizes = [8, 256], strides = [1, 1]} : vector<64x256xf32> to vector<8x256xf32>
    %296 = arith.truncf %294 : vector<8x64xf32> to vector<8x64xbf16>
    %cst_72 = arith.constant dense<0.000000e+00> : vector<8x256xf32>
    %297 = tpu.matmul %296, %18, %cst_72 {dimension_numbers = #tpu.dot_dimension_numbers<[1], [0], [0], [1], [0, 0, 1, 1], [], []>} : vector<8x64xbf16>, vector<64x256xbf16>, vector<8x256xf32> -> vector<8x256xf32>
    %298 = arith.addf %297, %21 : vector<8x256xf32>
    %299 = arith.truncf %270 : vector<8x64xf32> to vector<8x64xbf16>
    %cst_73 = arith.constant dense<0.000000e+00> : vector<8x256xf32>
    %300 = tpu.matmul %299, %14, %cst_73 {dimension_numbers = #tpu.dot_dimension_numbers<[1], [0], [0], [1], [0, 0, 1, 1], [], []>} : vector<8x64xbf16>, vector<64x256xbf16>, vector<8x256xf32> -> vector<8x256xf32>
    %301 = arith.addf %300, %295 : vector<8x256xf32>
    %302 = vector.extract_strided_slice %301 {offsets = [0, 0], sizes = [8, 128], strides = [1, 1]} : vector<8x256xf32> to vector<8x128xf32>
    %303 = vector.extract_strided_slice %301 {offsets = [0, 128], sizes = [8, 128], strides = [1, 1]} : vector<8x256xf32> to vector<8x128xf32>
    %304 = arith.negf %302 : vector<8x128xf32>
    %305 = math.exp %304 : vector<8x128xf32>
    %cst_74 = arith.constant 1.000000e+00 : f32
    %306 = vector.broadcast %cst_74 : f32 to vector<8x128xf32>
    %307 = arith.addf %306, %305 : vector<8x128xf32>
    %308 = arith.divf %306, %307 : vector<8x128xf32>
    %309 = arith.negf %303 : vector<8x128xf32>
    %310 = math.exp %309 : vector<8x128xf32>
    %cst_75 = arith.constant 1.000000e+00 : f32
    %311 = vector.broadcast %cst_75 : f32 to vector<8x128xf32>
    %312 = arith.addf %311, %310 : vector<8x128xf32>
    %313 = arith.divf %311, %312 : vector<8x128xf32>
    %314 = math.tanh %303 : vector<8x128xf32>
    %315 = arith.select %24, %313, %314 : vector<8x128xi1>, vector<8x128xf32>
    %316 = arith.select %24, %267, %315 : vector<8x128xi1>, vector<8x128xf32>
    %317 = arith.mulf %308, %316 : vector<8x128xf32>
    %c64_i32_76 = arith.constant 64 : i32
    %318 = tpu.dynamic_rotate %317 by %c64_i32_76 dim 1 : vector<8x128xf32>, i32 -> vector<8x128xf32>
    %319 = arith.addf %317, %318 : vector<8x128xf32>
    %320 = math.tanh %319 : vector<8x128xf32>
    %321 = arith.mulf %315, %320 : vector<8x128xf32>
    %322 = vector.extract_strided_slice %321 {offsets = [0, 0], sizes = [8, 64], strides = [1, 1]} : vector<8x128xf32> to vector<8x64xf32>
    %323 = arith.truncf %322 : vector<8x64xf32> to vector<8x64xbf16>
    %cst_77 = arith.constant dense<0.000000e+00> : vector<8x256xf32>
    %324 = tpu.matmul %323, %16, %cst_77 {dimension_numbers = #tpu.dot_dimension_numbers<[1], [0], [0], [1], [0, 0, 1, 1], [], []>} : vector<8x64xbf16>, vector<64x256xbf16>, vector<8x256xf32> -> vector<8x256xf32>
    %325 = arith.addf %324, %298 : vector<8x256xf32>
    %326 = vector.extract_strided_slice %325 {offsets = [0, 0], sizes = [8, 128], strides = [1, 1]} : vector<8x256xf32> to vector<8x128xf32>
    %327 = vector.extract_strided_slice %325 {offsets = [0, 128], sizes = [8, 128], strides = [1, 1]} : vector<8x256xf32> to vector<8x128xf32>
    %328 = arith.negf %326 : vector<8x128xf32>
    %329 = math.exp %328 : vector<8x128xf32>
    %cst_78 = arith.constant 1.000000e+00 : f32
    %330 = vector.broadcast %cst_78 : f32 to vector<8x128xf32>
    %331 = arith.addf %330, %329 : vector<8x128xf32>
    %332 = arith.divf %330, %331 : vector<8x128xf32>
    %333 = arith.negf %327 : vector<8x128xf32>
    %334 = math.exp %333 : vector<8x128xf32>
    %cst_79 = arith.constant 1.000000e+00 : f32
    %335 = vector.broadcast %cst_79 : f32 to vector<8x128xf32>
    %336 = arith.addf %335, %334 : vector<8x128xf32>
    %337 = arith.divf %335, %336 : vector<8x128xf32>
    %338 = math.tanh %327 : vector<8x128xf32>
    %339 = arith.select %24, %337, %338 : vector<8x128xi1>, vector<8x128xf32>
    %340 = arith.select %24, %291, %339 : vector<8x128xi1>, vector<8x128xf32>
    %341 = arith.mulf %332, %340 : vector<8x128xf32>
    %c64_i32_80 = arith.constant 64 : i32
    %342 = tpu.dynamic_rotate %341 by %c64_i32_80 dim 1 : vector<8x128xf32>, i32 -> vector<8x128xf32>
    %343 = arith.addf %341, %342 : vector<8x128xf32>
    %344 = math.tanh %343 : vector<8x128xf32>
    %345 = arith.mulf %339, %344 : vector<8x128xf32>
    %346 = vector.extract_strided_slice %345 {offsets = [0, 0], sizes = [8, 64], strides = [1, 1]} : vector<8x128xf32> to vector<8x64xf32>
    %347 = vector.extract_strided_slice %12 {offsets = [48, 0], sizes = [8, 256], strides = [1, 1]} : vector<64x256xf32> to vector<8x256xf32>
    %348 = arith.truncf %346 : vector<8x64xf32> to vector<8x64xbf16>
    %cst_81 = arith.constant dense<0.000000e+00> : vector<8x256xf32>
    %349 = tpu.matmul %348, %18, %cst_81 {dimension_numbers = #tpu.dot_dimension_numbers<[1], [0], [0], [1], [0, 0, 1, 1], [], []>} : vector<8x64xbf16>, vector<64x256xbf16>, vector<8x256xf32> -> vector<8x256xf32>
    %350 = arith.addf %349, %21 : vector<8x256xf32>
    %351 = arith.truncf %322 : vector<8x64xf32> to vector<8x64xbf16>
    %cst_82 = arith.constant dense<0.000000e+00> : vector<8x256xf32>
    %352 = tpu.matmul %351, %14, %cst_82 {dimension_numbers = #tpu.dot_dimension_numbers<[1], [0], [0], [1], [0, 0, 1, 1], [], []>} : vector<8x64xbf16>, vector<64x256xbf16>, vector<8x256xf32> -> vector<8x256xf32>
    %353 = arith.addf %352, %347 : vector<8x256xf32>
    %354 = vector.extract_strided_slice %353 {offsets = [0, 0], sizes = [8, 128], strides = [1, 1]} : vector<8x256xf32> to vector<8x128xf32>
    %355 = vector.extract_strided_slice %353 {offsets = [0, 128], sizes = [8, 128], strides = [1, 1]} : vector<8x256xf32> to vector<8x128xf32>
    %356 = arith.negf %354 : vector<8x128xf32>
    %357 = math.exp %356 : vector<8x128xf32>
    %cst_83 = arith.constant 1.000000e+00 : f32
    %358 = vector.broadcast %cst_83 : f32 to vector<8x128xf32>
    %359 = arith.addf %358, %357 : vector<8x128xf32>
    %360 = arith.divf %358, %359 : vector<8x128xf32>
    %361 = arith.negf %355 : vector<8x128xf32>
    %362 = math.exp %361 : vector<8x128xf32>
    %cst_84 = arith.constant 1.000000e+00 : f32
    %363 = vector.broadcast %cst_84 : f32 to vector<8x128xf32>
    %364 = arith.addf %363, %362 : vector<8x128xf32>
    %365 = arith.divf %363, %364 : vector<8x128xf32>
    %366 = math.tanh %355 : vector<8x128xf32>
    %367 = arith.select %24, %365, %366 : vector<8x128xi1>, vector<8x128xf32>
    %368 = arith.select %24, %319, %367 : vector<8x128xi1>, vector<8x128xf32>
    %369 = arith.mulf %360, %368 : vector<8x128xf32>
    %c64_i32_85 = arith.constant 64 : i32
    %370 = tpu.dynamic_rotate %369 by %c64_i32_85 dim 1 : vector<8x128xf32>, i32 -> vector<8x128xf32>
    %371 = arith.addf %369, %370 : vector<8x128xf32>
    %372 = math.tanh %371 : vector<8x128xf32>
    %373 = arith.mulf %367, %372 : vector<8x128xf32>
    %374 = vector.extract_strided_slice %373 {offsets = [0, 0], sizes = [8, 64], strides = [1, 1]} : vector<8x128xf32> to vector<8x64xf32>
    %375 = arith.truncf %374 : vector<8x64xf32> to vector<8x64xbf16>
    %cst_86 = arith.constant dense<0.000000e+00> : vector<8x256xf32>
    %376 = tpu.matmul %375, %16, %cst_86 {dimension_numbers = #tpu.dot_dimension_numbers<[1], [0], [0], [1], [0, 0, 1, 1], [], []>} : vector<8x64xbf16>, vector<64x256xbf16>, vector<8x256xf32> -> vector<8x256xf32>
    %377 = arith.addf %376, %350 : vector<8x256xf32>
    %378 = vector.extract_strided_slice %377 {offsets = [0, 0], sizes = [8, 128], strides = [1, 1]} : vector<8x256xf32> to vector<8x128xf32>
    %379 = vector.extract_strided_slice %377 {offsets = [0, 128], sizes = [8, 128], strides = [1, 1]} : vector<8x256xf32> to vector<8x128xf32>
    %380 = arith.negf %378 : vector<8x128xf32>
    %381 = math.exp %380 : vector<8x128xf32>
    %cst_87 = arith.constant 1.000000e+00 : f32
    %382 = vector.broadcast %cst_87 : f32 to vector<8x128xf32>
    %383 = arith.addf %382, %381 : vector<8x128xf32>
    %384 = arith.divf %382, %383 : vector<8x128xf32>
    %385 = arith.negf %379 : vector<8x128xf32>
    %386 = math.exp %385 : vector<8x128xf32>
    %cst_88 = arith.constant 1.000000e+00 : f32
    %387 = vector.broadcast %cst_88 : f32 to vector<8x128xf32>
    %388 = arith.addf %387, %386 : vector<8x128xf32>
    %389 = arith.divf %387, %388 : vector<8x128xf32>
    %390 = math.tanh %379 : vector<8x128xf32>
    %391 = arith.select %24, %389, %390 : vector<8x128xi1>, vector<8x128xf32>
    %392 = arith.select %24, %343, %391 : vector<8x128xi1>, vector<8x128xf32>
    %393 = arith.mulf %384, %392 : vector<8x128xf32>
    %c64_i32_89 = arith.constant 64 : i32
    %394 = tpu.dynamic_rotate %393 by %c64_i32_89 dim 1 : vector<8x128xf32>, i32 -> vector<8x128xf32>
    %395 = arith.addf %393, %394 : vector<8x128xf32>
    %396 = math.tanh %395 : vector<8x128xf32>
    %397 = arith.mulf %391, %396 : vector<8x128xf32>
    %398 = vector.extract_strided_slice %397 {offsets = [0, 0], sizes = [8, 64], strides = [1, 1]} : vector<8x128xf32> to vector<8x64xf32>
    %399 = vector.extract_strided_slice %12 {offsets = [56, 0], sizes = [8, 256], strides = [1, 1]} : vector<64x256xf32> to vector<8x256xf32>
    %400 = arith.truncf %398 : vector<8x64xf32> to vector<8x64xbf16>
    %cst_90 = arith.constant dense<0.000000e+00> : vector<8x256xf32>
    %401 = tpu.matmul %400, %18, %cst_90 {dimension_numbers = #tpu.dot_dimension_numbers<[1], [0], [0], [1], [0, 0, 1, 1], [], []>} : vector<8x64xbf16>, vector<64x256xbf16>, vector<8x256xf32> -> vector<8x256xf32>
    %402 = arith.addf %401, %21 : vector<8x256xf32>
    %403 = arith.truncf %374 : vector<8x64xf32> to vector<8x64xbf16>
    %cst_91 = arith.constant dense<0.000000e+00> : vector<8x256xf32>
    %404 = tpu.matmul %403, %14, %cst_91 {dimension_numbers = #tpu.dot_dimension_numbers<[1], [0], [0], [1], [0, 0, 1, 1], [], []>} : vector<8x64xbf16>, vector<64x256xbf16>, vector<8x256xf32> -> vector<8x256xf32>
    %405 = arith.addf %404, %399 : vector<8x256xf32>
    %406 = vector.extract_strided_slice %405 {offsets = [0, 0], sizes = [8, 128], strides = [1, 1]} : vector<8x256xf32> to vector<8x128xf32>
    %407 = vector.extract_strided_slice %405 {offsets = [0, 128], sizes = [8, 128], strides = [1, 1]} : vector<8x256xf32> to vector<8x128xf32>
    %408 = arith.negf %406 : vector<8x128xf32>
    %409 = math.exp %408 : vector<8x128xf32>
    %cst_92 = arith.constant 1.000000e+00 : f32
    %410 = vector.broadcast %cst_92 : f32 to vector<8x128xf32>
    %411 = arith.addf %410, %409 : vector<8x128xf32>
    %412 = arith.divf %410, %411 : vector<8x128xf32>
    %413 = arith.negf %407 : vector<8x128xf32>
    %414 = math.exp %413 : vector<8x128xf32>
    %cst_93 = arith.constant 1.000000e+00 : f32
    %415 = vector.broadcast %cst_93 : f32 to vector<8x128xf32>
    %416 = arith.addf %415, %414 : vector<8x128xf32>
    %417 = arith.divf %415, %416 : vector<8x128xf32>
    %418 = math.tanh %407 : vector<8x128xf32>
    %419 = arith.select %24, %417, %418 : vector<8x128xi1>, vector<8x128xf32>
    %420 = arith.select %24, %371, %419 : vector<8x128xi1>, vector<8x128xf32>
    %421 = arith.mulf %412, %420 : vector<8x128xf32>
    %c64_i32_94 = arith.constant 64 : i32
    %422 = tpu.dynamic_rotate %421 by %c64_i32_94 dim 1 : vector<8x128xf32>, i32 -> vector<8x128xf32>
    %423 = arith.addf %421, %422 : vector<8x128xf32>
    %424 = math.tanh %423 : vector<8x128xf32>
    %425 = arith.mulf %419, %424 : vector<8x128xf32>
    %426 = vector.extract_strided_slice %425 {offsets = [0, 0], sizes = [8, 64], strides = [1, 1]} : vector<8x128xf32> to vector<8x64xf32>
    %427 = arith.truncf %426 : vector<8x64xf32> to vector<8x64xbf16>
    %cst_95 = arith.constant dense<0.000000e+00> : vector<8x256xf32>
    %428 = tpu.matmul %427, %16, %cst_95 {dimension_numbers = #tpu.dot_dimension_numbers<[1], [0], [0], [1], [0, 0, 1, 1], [], []>} : vector<8x64xbf16>, vector<64x256xbf16>, vector<8x256xf32> -> vector<8x256xf32>
    %429 = arith.addf %428, %402 : vector<8x256xf32>
    %430 = vector.extract_strided_slice %429 {offsets = [0, 0], sizes = [8, 128], strides = [1, 1]} : vector<8x256xf32> to vector<8x128xf32>
    %431 = vector.extract_strided_slice %429 {offsets = [0, 128], sizes = [8, 128], strides = [1, 1]} : vector<8x256xf32> to vector<8x128xf32>
    %432 = arith.negf %430 : vector<8x128xf32>
    %433 = math.exp %432 : vector<8x128xf32>
    %cst_96 = arith.constant 1.000000e+00 : f32
    %434 = vector.broadcast %cst_96 : f32 to vector<8x128xf32>
    %435 = arith.addf %434, %433 : vector<8x128xf32>
    %436 = arith.divf %434, %435 : vector<8x128xf32>
    %437 = arith.negf %431 : vector<8x128xf32>
    %438 = math.exp %437 : vector<8x128xf32>
    %cst_97 = arith.constant 1.000000e+00 : f32
    %439 = vector.broadcast %cst_97 : f32 to vector<8x128xf32>
    %440 = arith.addf %439, %438 : vector<8x128xf32>
    %441 = arith.divf %439, %440 : vector<8x128xf32>
    %442 = math.tanh %431 : vector<8x128xf32>
    %443 = arith.select %24, %441, %442 : vector<8x128xi1>, vector<8x128xf32>
    %444 = arith.select %24, %395, %443 : vector<8x128xi1>, vector<8x128xf32>
    %445 = arith.mulf %436, %444 : vector<8x128xf32>
    %c64_i32_98 = arith.constant 64 : i32
    %446 = tpu.dynamic_rotate %445 by %c64_i32_98 dim 1 : vector<8x128xf32>, i32 -> vector<8x128xf32>
    %447 = arith.addf %445, %446 : vector<8x128xf32>
    %448 = math.tanh %447 : vector<8x128xf32>
    %449 = arith.mulf %443, %448 : vector<8x128xf32>
    %450 = vector.extract_strided_slice %449 {offsets = [0, 0], sizes = [8, 64], strides = [1, 1]} : vector<8x128xf32> to vector<8x64xf32>
    %c0_99 = arith.constant 0 : index
    %c0_100 = arith.constant 0 : index
    %451 = vector.load %arg9[%c0_99, %c0_100] : memref<64x16xf32, #tpu.memory_space<vmem>>, vector<64x16xf32>
    %cst_101 = arith.constant dense<0.000000e+00> : vector<8x16xf32>
    %452 = tpu.matmul %450, %451, %cst_101 {dimension_numbers = #tpu.dot_dimension_numbers<[1], [0], [0], [1], [0, 0, 1, 1], [], []>} : vector<8x64xf32>, vector<64x16xf32>, vector<8x16xf32> -> vector<8x16xf32>
    %c0_102 = arith.constant 0 : index
    %c0_103 = arith.constant 0 : index
    %453 = vector.load %arg10[%c0_102, %c0_103] : memref<1x16xf32, #tpu.memory_space<vmem>>, vector<1x16xf32>
    %454 = vector.broadcast %453 : vector<1x16xf32> to vector<8x16xf32>
    %455 = arith.addf %452, %454 : vector<8x16xf32>
    %c0_104 = arith.constant 0 : index
    %c0_105 = arith.constant 0 : index
    %456 = vector.load %arg13[%c0_104, %c0_105] : memref<8x16xf32, #tpu.memory_space<vmem>>, vector<8x16xf32>
    tpu.vector_store %arg13[%c0_104, %c0_105], %455 {strides = array<i32>} : memref<8x16xf32, #tpu.memory_space<vmem>>, vector<8x16xf32>,
    %c0_106 = arith.constant 0 : index
    %c0_107 = arith.constant 0 : index
    %c0_108 = arith.constant 0 : index
    %457 = vector.load %arg14[%c0_106, %c0_107, %c0_108] : memref<2x8x64xf32, #tpu.memory_space<vmem>>, vector<1x8x64xf32>
    %458 = vector.shape_cast %457 : vector<1x8x64xf32> to vector<8x64xf32>
    %459 = vector.shape_cast %426 : vector<8x64xf32> to vector<1x8x64xf32>
    tpu.vector_store %arg14[%c0_106, %c0_107, %c0_108], %459 {strides = array<i32>} : memref<2x8x64xf32, #tpu.memory_space<vmem>>, vector<1x8x64xf32>,
    %c1_109 = arith.constant 1 : index
    %c0_110 = arith.constant 0 : index
    %c0_111 = arith.constant 0 : index
    %460 = vector.load %arg14[%c1_109, %c0_110, %c0_111] : memref<2x8x64xf32, #tpu.memory_space<vmem>>, vector<1x8x64xf32>
    %461 = vector.shape_cast %460 : vector<1x8x64xf32> to vector<8x64xf32>
    %462 = vector.shape_cast %450 : vector<8x64xf32> to vector<1x8x64xf32>
    tpu.vector_store %arg14[%c1_109, %c0_110, %c0_111], %462 {strides = array<i32>} : memref<2x8x64xf32, #tpu.memory_space<vmem>>, vector<1x8x64xf32>,
    %463 = vector.extract_strided_slice %423 {offsets = [0, 0], sizes = [8, 64], strides = [1, 1]} : vector<8x128xf32> to vector<8x64xf32>
    %c0_112 = arith.constant 0 : index
    %c0_113 = arith.constant 0 : index
    %c0_114 = arith.constant 0 : index
    %464 = vector.load %arg15[%c0_112, %c0_113, %c0_114] : memref<2x8x64xf32, #tpu.memory_space<vmem>>, vector<1x8x64xf32>
    %465 = vector.shape_cast %464 : vector<1x8x64xf32> to vector<8x64xf32>
    %466 = vector.shape_cast %463 : vector<8x64xf32> to vector<1x8x64xf32>
    tpu.vector_store %arg15[%c0_112, %c0_113, %c0_114], %466 {strides = array<i32>} : memref<2x8x64xf32, #tpu.memory_space<vmem>>, vector<1x8x64xf32>,
    %467 = vector.extract_strided_slice %447 {offsets = [0, 0], sizes = [8, 64], strides = [1, 1]} : vector<8x128xf32> to vector<8x64xf32>
    %c1_115 = arith.constant 1 : index
    %c0_116 = arith.constant 0 : index
    %c0_117 = arith.constant 0 : index
    %468 = vector.load %arg15[%c1_115, %c0_116, %c0_117] : memref<2x8x64xf32, #tpu.memory_space<vmem>>, vector<1x8x64xf32>
    %469 = vector.shape_cast %468 : vector<1x8x64xf32> to vector<8x64xf32>
    %470 = vector.shape_cast %467 : vector<8x64xf32> to vector<1x8x64xf32>
    tpu.vector_store %arg15[%c1_115, %c0_116, %c0_117], %470 {strides = array<i32>} : memref<2x8x64xf32, #tpu.memory_space<vmem>>, vector<1x8x64xf32>,
    return
  }
  func.func @transform_0(%arg0: i32) -> (i32, i32) {
    %c0_i32 = arith.constant 0 : i32
    %c0_i32_0 = arith.constant 0 : i32
    %c0_i32_1 = arith.constant 0 : i32
    return %c0_i32, %c0_i32_0 : i32, i32
  }
  func.func @transform_1(%arg0: i32) -> (i32, i32) {
    %c0_i32 = arith.constant 0 : i32
    %c0_i32_0 = arith.constant 0 : i32
    %c0_i32_1 = arith.constant 0 : i32
    return %c0_i32, %c0_i32_0 : i32, i32
  }
  func.func @transform_2(%arg0: i32) -> (i32, i32) {
    %c0_i32 = arith.constant 0 : i32
    %c0_i32_0 = arith.constant 0 : i32
    %c0_i32_1 = arith.constant 0 : i32
    return %c0_i32, %c0_i32_0 : i32, i32
  }
  func.func @transform_3(%arg0: i32) -> (i32, i32) {
    %c0_i32 = arith.constant 0 : i32
    %c0_i32_0 = arith.constant 0 : i32
    %c0_i32_1 = arith.constant 0 : i32
    return %c0_i32, %c0_i32_0 : i32, i32
  }
  func.func @transform_4(%arg0: i32) -> (i32, i32) {
    %c0_i32 = arith.constant 0 : i32
    %c0_i32_0 = arith.constant 0 : i32
    %c0_i32_1 = arith.constant 0 : i32
    return %c0_i32, %c0_i32_0 : i32, i32
  }
  func.func @transform_5(%arg0: i32) -> (i32, i32) {
    %c0_i32 = arith.constant 0 : i32
    %c0_i32_0 = arith.constant 0 : i32
    %c0_i32_1 = arith.constant 0 : i32
    return %c0_i32, %c0_i32_0 : i32, i32
  }
  func.func @transform_6(%arg0: i32) -> (i32, i32) {
    %c0_i32 = arith.constant 0 : i32
    %c0_i32_0 = arith.constant 0 : i32
    %c0_i32_1 = arith.constant 0 : i32
    return %c0_i32, %c0_i32_0 : i32, i32
  }
  func.func @transform_7(%arg0: i32) -> (i32, i32) {
    %c0_i32 = arith.constant 0 : i32
    %c0_i32_0 = arith.constant 0 : i32
    %c0_i32_1 = arith.constant 0 : i32
    return %c0_i32, %c0_i32_0 : i32, i32
  }
  func.func @transform_8(%arg0: i32) -> (i32, i32) {
    %c0_i32 = arith.constant 0 : i32
    %c0_i32_0 = arith.constant 0 : i32
    %c0_i32_1 = arith.constant 0 : i32
    return %c0_i32, %c0_i32_0 : i32, i32
  }
  func.func @transform_9(%arg0: i32) -> (i32, i32) {
    %c0_i32 = arith.constant 0 : i32
    %c0_i32_0 = arith.constant 0 : i32
    %c0_i32_1 = arith.constant 0 : i32
    return %c0_i32, %c0_i32_0 : i32, i32
  }
  func.func @transform_10(%arg0: i32) -> (i32, i32, i32) {
    %c0_i32 = arith.constant 0 : i32
    %c0_i32_0 = arith.constant 0 : i32
    %c0_i32_1 = arith.constant 0 : i32
    %c0_i32_2 = arith.constant 0 : i32
    return %c0_i32, %c0_i32_0, %c0_i32_1 : i32, i32, i32
  }
  func.func @transform_11(%arg0: i32) -> (i32, i32, i32) {
    %c0_i32 = arith.constant 0 : i32
    %c0_i32_0 = arith.constant 0 : i32
    %c0_i32_1 = arith.constant 0 : i32
    %c0_i32_2 = arith.constant 0 : i32
    return %c0_i32, %c0_i32_0, %c0_i32_1 : i32, i32, i32
  }
  func.func @transform_12(%arg0: i32) -> (i32, i32) {
    %c0_i32 = arith.constant 0 : i32
    %c0_i32_0 = arith.constant 0 : i32
    %c0_i32_1 = arith.constant 0 : i32
    return %c0_i32, %c0_i32_0 : i32, i32
  }
  func.func @transform_13(%arg0: i32) -> (i32, i32, i32) {
    %c0_i32 = arith.constant 0 : i32
    %c0_i32_0 = arith.constant 0 : i32
    %c0_i32_1 = arith.constant 0 : i32
    %c0_i32_2 = arith.constant 0 : i32
    return %c0_i32, %c0_i32_0, %c0_i32_1 : i32, i32, i32
  }
  func.func @transform_14(%arg0: i32) -> (i32, i32, i32) {
    %c0_i32 = arith.constant 0 : i32
    %c0_i32_0 = arith.constant 0 : i32
    %c0_i32_1 = arith.constant 0 : i32
    %c0_i32_2 = arith.constant 0 : i32
    return %c0_i32, %c0_i32_0, %c0_i32_1 : i32, i32, i32
  }
}

</mosaic_0001>

<llo_original>
// kernel: name_generator_forward.1
$region0: #{name_generator_forward.1}
  #allocation0 [shape = 'u32[]', space=smem, size = 0x4, offset = 0x4, fixed_abs, tag = 'smem constant byte address 0x4 - core index']
  #allocation1 [shape = 'u32[72,128]{1,0:T(1,128)}', space=vmem, size = 0x9000, scoped, tag = 'internal scratch']
  %s0 = inlined_call_operand.vmem [shape: s32[64,1], index: 0, kind: input, shape index: {}]
  %s1 = inlined_call_operand.vmem [shape: f32[17,32], index: 1, kind: input, shape index: {}]
  %s2 = inlined_call_operand.vmem [shape: f32[32,256], index: 2, kind: input, shape index: {}]
  %s3 = inlined_call_operand.vmem [shape: f32[64,256], index: 3, kind: input, shape index: {}]
  %s4 = inlined_call_operand.vmem [shape: f32[1,256], index: 4, kind: input, shape index: {}]
  %s5 = inlined_call_operand.vmem [shape: f32[64,256], index: 5, kind: input, shape index: {}]
  %s6 = inlined_call_operand.vmem [shape: f32[64,256], index: 6, kind: input, shape index: {}]
  %s7 = inlined_call_operand.vmem [shape: f32[1,256], index: 7, kind: input, shape index: {}]
  %s8 = inlined_call_operand.vmem [shape: f32[64,16], index: 8, kind: input, shape index: {}]
  %s9 = inlined_call_operand.vmem [shape: f32[1,16], index: 9, kind: input, shape index: {}]
  %s10 = inlined_call_operand.vmem [shape: f32[2,8,64], index: 10, kind: input, shape index: {}]
  %s11 = inlined_call_operand.vmem [shape: f32[2,8,64], index: 11, kind: input, shape index: {}]
  %s12 = inlined_call_operand.vmem [shape: f32[8,16], index: 12, kind: output, shape index: {0}]
  %s13 = inlined_call_operand.vmem [shape: f32[2,8,64], index: 13, kind: output, shape index: {1}]
  %s14 = inlined_call_operand.vmem [shape: f32[2,8,64], index: 14, kind: output, shape index: {2}]
  %15 = xla_tuple %s12, %s13, %s14
  %s16 = sld [smem:[#allocation0]]
  $region74: #{name_generator_forward.1} parent=0
    _
  %s18 = ssub.s32 1, %s16
  %s19 = scalar_select 0, %s18, %s16
  // Predicated region
  $region2: #{name_generator_forward.1} parent=0 // pred_check
    _
  $region3: #{name_generator_forward.1} parent=0 // pred_check_branch
    %21 = sbr.rel (0) target = $region5
  $region4: #{name_generator_forward.1} parent=0 // pred_region
    _
  $region5: #{name_generator_forward.1} parent=0 // pred_fallthru
    _
  // Predicated region
  $region6: #{name_generator_forward.1} parent=0 // pred_check
    _
  $region7: #{name_generator_forward.1} parent=0 // pred_check_branch
    %23 = sbr.rel (0) target = $region9
  $region8: #{name_generator_forward.1} parent=0 // pred_region
    _
  $region9: #{name_generator_forward.1} parent=0 // pred_fallthru
    _
  // Predicated region
  $region10: #{name_generator_forward.1} parent=0 // pred_check
    _
  $region11: #{name_generator_forward.1} parent=0 // pred_check_branch
    %25 = sbr.rel (0) target = $region13
  $region12: #{name_generator_forward.1} parent=0 // pred_region
    _
  $region13: #{name_generator_forward.1} parent=0 // pred_fallthru
    _
  // Predicated region
  $region14: #{name_generator_forward.1} parent=0 // pred_check
    _
  $region15: #{name_generator_forward.1} parent=0 // pred_check_branch
    %27 = sbr.rel (0) target = $region17
  $region16: #{name_generator_forward.1} parent=0 // pred_region
    _
  $region17: #{name_generator_forward.1} parent=0 // pred_fallthru
    _
  // Predicated region
  $region18: #{name_generator_forward.1} parent=0 // pred_check
    _
  $region19: #{name_generator_forward.1} parent=0 // pred_check_branch
    %29 = sbr.rel (0) target = $region21
  $region20: #{name_generator_forward.1} parent=0 // pred_region
    _
  $region21: #{name_generator_forward.1} parent=0 // pred_fallthru
    _
  // Predicated region
  $region22: #{name_generator_forward.1} parent=0 // pred_check
    _
  $region23: #{name_generator_forward.1} parent=0 // pred_check_branch
    %31 = sbr.rel (0) target = $region25
  $region24: #{name_generator_forward.1} parent=0 // pred_region
    _
  $region25: #{name_generator_forward.1} parent=0 // pred_fallthru
    _
  // Predicated region
  $region26: #{name_generator_forward.1} parent=0 // pred_check
    _
  $region27: #{name_generator_forward.1} parent=0 // pred_check_branch
    %33 = sbr.rel (0) target = $region29
  $region28: #{name_generator_forward.1} parent=0 // pred_region
    _
  $region29: #{name_generator_forward.1} parent=0 // pred_fallthru
    _
  // Predicated region
  $region30: #{name_generator_forward.1} parent=0 // pred_check
    _
  $region31: #{name_generator_forward.1} parent=0 // pred_check_branch
    %35 = sbr.rel (0) target = $region33
  $region32: #{name_generator_forward.1} parent=0 // pred_region
    _
  $region33: #{name_generator_forward.1} parent=0 // pred_fallthru
    _
  // Predicated region
  $region34: #{name_generator_forward.1} parent=0 // pred_check
    _
  $region35: #{name_generator_forward.1} parent=0 // pred_check_branch
    %37 = sbr.rel (0) target = $region37
  $region36: #{name_generator_forward.1} parent=0 // pred_region
    _
  $region37: #{name_generator_forward.1} parent=0 // pred_fallthru
    _
  // Predicated region
  $region38: #{name_generator_forward.1} parent=0 // pred_check
    _
  $region39: #{name_generator_forward.1} parent=0 // pred_check_branch
    %39 = sbr.rel (0) target = $region41
  $region40: #{name_generator_forward.1} parent=0 // pred_region
    _
  $region41: #{name_generator_forward.1} parent=0 // pred_fallthru
    _
  // Predicated region
  $region42: #{name_generator_forward.1} parent=0 // pred_check
    _
  $region43: #{name_generator_forward.1} parent=0 // pred_check_branch
    %41 = sbr.rel (0) target = $region45
  $region44: #{name_generator_forward.1} parent=0 // pred_region
    _
  $region45: #{name_generator_forward.1} parent=0 // pred_fallthru
    _
  // Predicated region
  $region46: #{name_generator_forward.1} parent=0 // pred_check
    _
  $region47: #{name_generator_forward.1} parent=0 // pred_check_branch
    %43 = sbr.rel (0) target = $region49
  $region48: #{name_generator_forward.1} parent=0 // pred_region
    _
  $region49: #{name_generator_forward.1} parent=0 // pred_fallthru
    _
  %v45 = vld [vmem:[%s0] sm:$0xff]
  %v46 = vld [vmem:[%s0 + $0x8] sm:$0xff]
  %v47 = vld [vmem:[%s0 + $0x10] sm:$0xff]
  %v48 = vld [vmem:[%s0 + $0x18] sm:$0xff]
  %v49 = vld [vmem:[%s0 + $0x20] sm:$0xff]
  %v50 = vld [vmem:[%s0 + $0x28] sm:$0xff]
  %v51 = vld [vmem:[%s0 + $0x30] sm:$0xff]
  %v52 = vld [vmem:[%s0 + $0x38] sm:$0xff]
  %v53 = vlaneseq
  %v54 = vand.u32 %v53, 127
  %55 = vset.pattern.permute.xlu0 0
  %56 = vperm.xlu0 %55, %v45
  %v57 = vpop.permute.xlu0 %56
  %58 = vset.pattern.permute.xlu0 0
  %59 = vperm.xlu0 %58, %v46
  %v60 = vpop.permute.xlu0 %59
  %61 = vset.pattern.permute.xlu0 0
  %62 = vperm.xlu0 %61, %v47
  %v63 = vpop.permute.xlu0 %62
  %64 = vset.pattern.permute.xlu0 0
  %65 = vperm.xlu0 %64, %v48
  %v66 = vpop.permute.xlu0 %65
  %67 = vset.pattern.permute.xlu0 0
  %68 = vperm.xlu0 %67, %v49
  %v69 = vpop.permute.xlu0 %68
  %70 = vset.pattern.permute.xlu0 0
  %71 = vperm.xlu0 %70, %v50
  %v72 = vpop.permute.xlu0 %71
  %73 = vset.pattern.permute.xlu0 0
  %74 = vperm.xlu0 %73, %v51
  %v75 = vpop.permute.xlu0 %74
  %76 = vset.pattern.permute.xlu0 0
  %77 = vperm.xlu0 %76, %v52
  %v78 = vpop.permute.xlu0 %77
  %vm79 = vcmp.eq.s32.totalorder %v57, %v54
  %vm80 = vcmp.eq.s32.totalorder %v60, %v54
  %vm81 = vcmp.eq.s32.totalorder %v63, %v54
  %vm82 = vcmp.eq.s32.totalorder %v66, %v54
  %vm83 = vcmp.eq.s32.totalorder %v69, %v54
  %vm84 = vcmp.eq.s32.totalorder %v72, %v54
  %vm85 = vcmp.eq.s32.totalorder %v75, %v54
  %vm86 = vcmp.eq.s32.totalorder %v78, %v54
  %v87 = vsel %vm79, 1, 0
  %v88 = vsel %vm80, 1, 0
  %v89 = vsel %vm81, 1, 0
  %v90 = vsel %vm82, 1, 0
  %v91 = vsel %vm83, 1, 0
  %v92 = vsel %vm84, 1, 0
  %v93 = vsel %vm85, 1, 0
  %v94 = vsel %vm86, 1, 0
  %v95 = vcvt.s32.f32 %v87
  %v96 = vcvt.s32.f32 %v88
  %v97 = vcvt.s32.f32 %v89
  %v98 = vcvt.s32.f32 %v90
  %v99 = vcvt.s32.f32 %v91
  %v100 = vcvt.s32.f32 %v92
  %v101 = vcvt.s32.f32 %v93
  %v102 = vcvt.s32.f32 %v94
  %v103 = vld [vmem:[%s1] sm:$0xff]
  %v104 = vld [vmem:[%s1 + $0x8] sm:$0xff]
  %v105 = vld [vmem:[%s1 + $0x10] sm:$0x1]
  %v106 = vld [vmem:[%s2] sm:$0xff]
  %v107 = vld [vmem:[%s2 + $0x8] sm:$0xff]
  %v108 = vld [vmem:[%s2 + $0x10] sm:$0xff]
  %v109 = vld [vmem:[%s2 + $0x18] sm:$0xff]
  %v110 = vld [vmem:[%s2 + $0x20] sm:$0xff]
  %v111 = vld [vmem:[%s2 + $0x28] sm:$0xff]
  %v112 = vld [vmem:[%s2 + $0x30] sm:$0xff]
  %v113 = vld [vmem:[%s2 + $0x38] sm:$0xff]
  %vm114 = vcmask 261120
  %v116 = vsel %vm114, %v103, 0
  %v119 = vsel %vm114, %v104, 0
  %v122 = vsel %vm114, %v105, 0
  %124 = vmatpush.msra.mxu0 0.0
  %125 = vmatpush.msra.mxu0 0.0
  %126 = vmatpush.msra.mxu0 0.0
  %127 = vmatpush.msra.mxu0 0.0
  %128 = vmatpush.msra.mxu0 0.0
  %129 = vmatpush.msra.mxu0 0.0
  %130 = vmatpush.msra.mxu0 0.0
  %131 = vmatpush.msra.mxu0 0.0
  %132 = vmatpush.msra.mxu0 0.0
  %133 = vmatpush.msra.mxu0 0.0
  %134 = vmatpush.msra.mxu0 0.0
  %135 = vmatpush.msra.mxu0 0.0
  %136 = vmatpush.msra.mxu0 %v112
  %137 = vmatpush.msra.mxu0 %v110
  %138 = vmatpush.msra.mxu0 %v108
  %139 = vmatpush.msra.mxu0 %v106
  %140 = vmatmul.f32.gmra.mxu0 %v116
  %v141 = vpop.f32.mrf.mxu0
  %v142 = vadd.f32 0.0, %v141
  %143 = vmatmul.f32.gmra.mxu0 %v119
  %v144 = vpop.f32.mrf.mxu0
  %v145 = vadd.f32 0.0, %v144
  %146 = vmatmul.f32.gmra.mxu0 %v122
  %v147 = vpop.f32.mrf.mxu0
  %v148 = vadd.f32 0.0, %v147
  %149 = vdwg.mxu0
  %150 = vmatpush.msra.mxu0 0.0
  %151 = vmatpush.msra.mxu0 0.0
  %152 = vmatpush.msra.mxu0 0.0
  %153 = vmatpush.msra.mxu0 0.0
  %154 = vmatpush.msra.mxu0 0.0
  %155 = vmatpush.msra.mxu0 0.0
  %156 = vmatpush.msra.mxu0 0.0
  %157 = vmatpush.msra.mxu0 0.0
  %158 = vmatpush.msra.mxu0 0.0
  %159 = vmatpush.msra.mxu0 0.0
  %160 = vmatpush.msra.mxu0 0.0
  %161 = vmatpush.msra.mxu0 0.0
  %162 = vmatpush.msra.mxu0 %v113
  %163 = vmatpush.msra.mxu0 %v111
  %164 = vmatpush.msra.mxu0 %v109
  %165 = vmatpush.msra.mxu0 %v107
  %166 = vmatmul.f32.gmra.mxu0 %v116
  %v167 = vpop.f32.mrf.mxu0
  %v168 = vadd.f32 0.0, %v167
  %169 = vmatmul.f32.gmra.mxu0 %v119
  %v170 = vpop.f32.mrf.mxu0
  %v171 = vadd.f32 0.0, %v170
  %172 = vmatmul.f32.gmra.mxu0 %v122
  %v173 = vpop.f32.mrf.mxu0
  %v174 = vadd.f32 0.0, %v173
  %175 = vdwg.mxu0
  %v176 = vld [vmem:[%s4] sm:$0x3]
  %v178 = vperm.slane %v176, 0
  %v179 = vperm.slane %v176, 1
  %vm182 = vcmask 138240
  %v184 = vsel %vm182, %v95, 0
  %v187 = vsel %vm182, %v96, 0
  %v190 = vsel %vm182, %v97, 0
  %v193 = vsel %vm182, %v98, 0
  %v196 = vsel %vm182, %v99, 0
  %v199 = vsel %vm182, %v100, 0
  %v202 = vsel %vm182, %v101, 0
  %v205 = vsel %vm182, %v102, 0
  %vm207 = vcmask 1040384
  %v209 = vsel %vm207, %v148, 0
  %v212 = vsel %vm207, %v174, 0
  %214 = vmatpush.msra.mxu0 0.0
  %215 = vmatpush.msra.mxu0 0.0
  %216 = vmatpush.msra.mxu0 0.0
  %217 = vmatpush.msra.mxu0 0.0
  %218 = vmatpush.msra.mxu0 0.0
  %219 = vmatpush.msra.mxu0 0.0
  %220 = vmatpush.msra.mxu0 0.0
  %221 = vmatpush.msra.mxu0 0.0
  %222 = vmatpush.msra.mxu0 0.0
  %223 = vmatpush.msra.mxu0 0.0
  %224 = vmatpush.msra.mxu0 0.0
  %225 = vmatpush.msra.mxu0 0.0
  %226 = vmatpush.msra.mxu0 0.0
  %227 = vmatpush.msra.mxu0 %v209
  %228 = vmatpush.msra.mxu0 %v145
  %229 = vmatpush.msra.mxu0 %v142
  %230 = vmatmul.f32.gmra.mxu0 %v184
  %v231 = vpop.f32.mrf.mxu0
  %v232 = vadd.f32 %v178, %v231
  %233 = vmatmul.f32.gmra.mxu0 %v187
  %v234 = vpop.f32.mrf.mxu0
  %v235 = vadd.f32 %v178, %v234
  %236 = vmatmul.f32.gmra.mxu0 %v190
  %v237 = vpop.f32.mrf.mxu0
  %v238 = vadd.f32 %v178, %v237
  %239 = vmatmul.f32.gmra.mxu0 %v193
  %v240 = vpop.f32.mrf.mxu0
  %v241 = vadd.f32 %v178, %v240
  %242 = vmatmul.f32.gmra.mxu0 %v196
  %v243 = vpop.f32.mrf.mxu0
  %v244 = vadd.f32 %v178, %v243
  %245 = vmatmul.f32.gmra.mxu0 %v199
  %v246 = vpop.f32.mrf.mxu0
  %v247 = vadd.f32 %v178, %v246
  %248 = vmatmul.f32.gmra.mxu0 %v202
  %v249 = vpop.f32.mrf.mxu0
  %v250 = vadd.f32 %v178, %v249
  %251 = vmatmul.f32.gmra.mxu0 %v205
  %v252 = vpop.f32.mrf.mxu0
  %v253 = vadd.f32 %v178, %v252
  %254 = vdwg.mxu0
  %255 = vmatpush.msra.mxu0 0.0
  %256 = vmatpush.msra.mxu0 0.0
  %257 = vmatpush.msra.mxu0 0.0
  %258 = vmatpush.msra.mxu0 0.0
  %259 = vmatpush.msra.mxu0 0.0
  %260 = vmatpush.msra.mxu0 0.0
  %261 = vmatpush.msra.mxu0 0.0
  %262 = vmatpush.msra.mxu0 0.0
  %263 = vmatpush.msra.mxu0 0.0
  %264 = vmatpush.msra.mxu0 0.0
  %265 = vmatpush.msra.mxu0 0.0
  %266 = vmatpush.msra.mxu0 0.0
  %267 = vmatpush.msra.mxu0 0.0
  %268 = vmatpush.msra.mxu0 %v212
  %269 = vmatpush.msra.mxu0 %v171
  %270 = vmatpush.msra.mxu0 %v168
  %271 = vmatmul.f32.gmra.mxu0 %v184
  %v272 = vpop.f32.mrf.mxu0
  %v273 = vadd.f32 %v179, %v272
  %274 = vmatmul.f32.gmra.mxu0 %v187
  %v275 = vpop.f32.mrf.mxu0
  %v276 = vadd.f32 %v179, %v275
  %277 = vmatmul.f32.gmra.mxu0 %v190
  %v278 = vpop.f32.mrf.mxu0
  %v279 = vadd.f32 %v179, %v278
  %280 = vmatmul.f32.gmra.mxu0 %v193
  %v281 = vpop.f32.mrf.mxu0
  %v282 = vadd.f32 %v179, %v281
  %283 = vmatmul.f32.gmra.mxu0 %v196
  %v284 = vpop.f32.mrf.mxu0
  %v285 = vadd.f32 %v179, %v284
  %286 = vmatmul.f32.gmra.mxu0 %v199
  %v287 = vpop.f32.mrf.mxu0
  %v288 = vadd.f32 %v179, %v287
  %289 = vmatmul.f32.gmra.mxu0 %v202
  %v290 = vpop.f32.mrf.mxu0
  %v291 = vadd.f32 %v179, %v290
  %292 = vmatmul.f32.gmra.mxu0 %v205
  %v293 = vpop.f32.mrf.mxu0
  %v294 = vadd.f32 %v179, %v293
  %295 = vdwg.mxu0
  %v296 = vld [vmem:[%s3] sm:$0xff]
  %v297 = vld [vmem:[%s3 + $0x8] sm:$0xff]
  %v298 = vld [vmem:[%s3 + $0x10] sm:$0xff]
  %v299 = vld [vmem:[%s3 + $0x18] sm:$0xff]
  %v300 = vld [vmem:[%s3 + $0x20] sm:$0xff]
  %v301 = vld [vmem:[%s3 + $0x28] sm:$0xff]
  %v302 = vld [vmem:[%s3 + $0x30] sm:$0xff]
  %v303 = vld [vmem:[%s3 + $0x38] sm:$0xff]
  %v304 = vld [vmem:[%s3 + $0x40] sm:$0xff]
  %v305 = vld [vmem:[%s3 + $0x48] sm:$0xff]
  %v306 = vld [vmem:[%s3 + $0x50] sm:$0xff]
  %v307 = vld [vmem:[%s3 + $0x58] sm:$0xff]
  %v308 = vld [vmem:[%s3 + $0x60] sm:$0xff]
  %v309 = vld [vmem:[%s3 + $0x68] sm:$0xff]
  %v310 = vld [vmem:[%s3 + $0x70] sm:$0xff]
  %v311 = vld [vmem:[%s3 + $0x78] sm:$0xff]
  %v312 = vpack.c.bf16 %v298, %v296
  %v313 = vpack.c.bf16 %v299, %v297
  %v314 = vpack.c.bf16 %v302, %v300
  %v315 = vpack.c.bf16 %v303, %v301
  %v316 = vpack.c.bf16 %v306, %v304
  %v317 = vpack.c.bf16 %v307, %v305
  %v318 = vpack.c.bf16 %v310, %v308
  %v319 = vpack.c.bf16 %v311, %v309
  %v320 = vld [vmem:[%s5] sm:$0xff]
  %v321 = vld [vmem:[%s5 + $0x8] sm:$0xff]
  %v322 = vld [vmem:[%s5 + $0x10] sm:$0xff]
  %v323 = vld [vmem:[%s5 + $0x18] sm:$0xff]
  %v324 = vld [vmem:[%s5 + $0x20] sm:$0xff]
  %v325 = vld [vmem:[%s5 + $0x28] sm:$0xff]
  %v326 = vld [vmem:[%s5 + $0x30] sm:$0xff]
  %v327 = vld [vmem:[%s5 + $0x38] sm:$0xff]
  %v328 = vld [vmem:[%s5 + $0x40] sm:$0xff]
  %v329 = vld [vmem:[%s5 + $0x48] sm:$0xff]
  %v330 = vld [vmem:[%s5 + $0x50] sm:$0xff]
  %v331 = vld [vmem:[%s5 + $0x58] sm:$0xff]
  %v332 = vld [vmem:[%s5 + $0x60] sm:$0xff]
  %v333 = vld [vmem:[%s5 + $0x68] sm:$0xff]
  %v334 = vld [vmem:[%s5 + $0x70] sm:$0xff]
  %v335 = vld [vmem:[%s5 + $0x78] sm:$0xff]
  %v336 = vpack.c.bf16 %v322, %v320
  %v337 = vpack.c.bf16 %v323, %v321
  %v338 = vpack.c.bf16 %v326, %v324
  %v339 = vpack.c.bf16 %v327, %v325
  %v340 = vpack.c.bf16 %v330, %v328
  %v341 = vpack.c.bf16 %v331, %v329
  %v342 = vpack.c.bf16 %v334, %v332
  %v343 = vpack.c.bf16 %v335, %v333
  %v344 = vld [vmem:[%s6] sm:$0xff]
  %v345 = vld [vmem:[%s6 + $0x8] sm:$0xff]
  %v346 = vld [vmem:[%s6 + $0x10] sm:$0xff]
  %v347 = vld [vmem:[%s6 + $0x18] sm:$0xff]
  %v348 = vld [vmem:[%s6 + $0x20] sm:$0xff]
  %v349 = vld [vmem:[%s6 + $0x28] sm:$0xff]
  %v350 = vld [vmem:[%s6 + $0x30] sm:$0xff]
  %v351 = vld [vmem:[%s6 + $0x38] sm:$0xff]
  %v352 = vld [vmem:[%s6 + $0x40] sm:$0xff]
  %v353 = vld [vmem:[%s6 + $0x48] sm:$0xff]
  %v354 = vld [vmem:[%s6 + $0x50] sm:$0xff]
  %v355 = vld [vmem:[%s6 + $0x58] sm:$0xff]
  %v356 = vld [vmem:[%s6 + $0x60] sm:$0xff]
  %v357 = vld [vmem:[%s6 + $0x68] sm:$0xff]
  %v358 = vld [vmem:[%s6 + $0x70] sm:$0xff]
  %v359 = vld [vmem:[%s6 + $0x78] sm:$0xff]
  %v360 = vpack.c.bf16 %v346, %v344
  %v361 = vpack.c.bf16 %v347, %v345
  %v362 = vpack.c.bf16 %v350, %v348
  %v363 = vpack.c.bf16 %v351, %v349
  %v364 = vpack.c.bf16 %v354, %v352
  %v365 = vpack.c.bf16 %v355, %v353
  %v366 = vpack.c.bf16 %v358, %v356
  %v367 = vpack.c.bf16 %v359, %v357
  %v368 = vld [vmem:[%s7] sm:$0x3]
  %v370 = vperm.slane %v368, 0
  %v371 = vperm.slane %v368, 1
  %vm374 = vcmp.lt.s32.totalorder %v54, 64
  %v375 = vld [vmem:[%s10] sm:$0xff]
  %s376 = scalar_lea.vmem %s10, 8
  %v377 = vld [vmem:[%s376] sm:$0xff]
  %v378 = vld [vmem:[%s11] sm:$0xff]
  %s379 = scalar_lea.vmem %s11, 8
  %v380 = vld [vmem:[%s379] sm:$0xff]
  %382 = vrot.lane.b32.xlu0 %v378, 64
  %v383 = vpop.permute.xlu0 %382
  %vm385 = vcmask 523264
  %v386 = vsel %vm385, %v378, %v383
  %388 = vrot.lane.b32.xlu0 %v380, 64
  %v389 = vpop.permute.xlu0 %388
  %v391 = vsel %vm385, %v380, %v389
  %v392 = vpack.c.bf16 %v377, %v377
  %v394 = vsel %vm385, %v392, 0
  %396 = vmatpush.bf16.msra.mxu0 0
  %397 = vmatpush.bf16.msra.mxu0 0
  %398 = vmatpush.bf16.msra.mxu0 0
  %399 = vmatpush.bf16.msra.mxu0 0
  %400 = vmatpush.bf16.msra.mxu0 %v366
  %401 = vmatpush.bf16.msra.mxu0 %v364
  %402 = vmatpush.bf16.msra.mxu0 %v362
  %403 = vmatpush.bf16.msra.mxu0 %v360
  %404 = vmatmul.bf16.gmra.mxu0 %v394
  %v405 = vpop.f32.mrf.mxu0
  %v406 = vadd.f32 %v370, %v405
  %v407 = vpop.f32.mrf.mxu0
  %408 = vdwg.mxu0
  %409 = vmatpush.bf16.msra.mxu0 0
  %410 = vmatpush.bf16.msra.mxu0 0
  %411 = vmatpush.bf16.msra.mxu0 0
  %412 = vmatpush.bf16.msra.mxu0 0
  %413 = vmatpush.bf16.msra.mxu0 %v367
  %414 = vmatpush.bf16.msra.mxu0 %v365
  %415 = vmatpush.bf16.msra.mxu0 %v363
  %416 = vmatpush.bf16.msra.mxu0 %v361
  %417 = vmatmul.bf16.gmra.mxu0 %v394
  %v418 = vpop.f32.mrf.mxu0
  %v419 = vadd.f32 %v371, %v418
  %v420 = vpop.f32.mrf.mxu0
  %421 = vdwg.mxu0
  %v422 = vpack.c.bf16 %v375, %v375
  %v424 = vsel %vm385, %v422, 0
  %426 = vmatpush.bf16.msra.mxu0 0
  %427 = vmatpush.bf16.msra.mxu0 0
  %428 = vmatpush.bf16.msra.mxu0 0
  %429 = vmatpush.bf16.msra.mxu0 0
  %430 = vmatpush.bf16.msra.mxu0 %v318
  %431 = vmatpush.bf16.msra.mxu0 %v316
  %432 = vmatpush.bf16.msra.mxu0 %v314
  %433 = vmatpush.bf16.msra.mxu0 %v312
  %434 = vmatmul.bf16.gmra.mxu0 %v424
  %v435 = vpop.f32.mrf.mxu0
  %v436 = vadd.f32 %v232, %v435
  %v437 = vpop.f32.mrf.mxu0
  %438 = vdwg.mxu0
  %439 = vmatpush.bf16.msra.mxu0 0
  %440 = vmatpush.bf16.msra.mxu0 0
  %441 = vmatpush.bf16.msra.mxu0 0
  %442 = vmatpush.bf16.msra.mxu0 0
  %443 = vmatpush.bf16.msra.mxu0 %v319
  %444 = vmatpush.bf16.msra.mxu0 %v317
  %445 = vmatpush.bf16.msra.mxu0 %v315
  %446 = vmatpush.bf16.msra.mxu0 %v313
  %447 = vmatmul.bf16.gmra.mxu0 %v424
  %v448 = vpop.f32.mrf.mxu0
  %v449 = vadd.f32 %v273, %v448
  %v450 = vpop.f32.mrf.mxu0
  %451 = vdwg.mxu0
  %v452 = vxor.u32 %v436, 2147483648
  %v453 = vmul.f32 %v452, 1.442695
  %v454 = vpow.pop %v453
  %v455 = vadd.f32 %v454, 1.0
  %v456 = vrcp.pop %v455
  %v457 = vmul.f32 %v455, %v456
  %v458 = vsub.f32 1.0, %v457
  %v459 = vmul.f32 %v456, %v458
  %v460 = vadd.f32 %v456, %v459
  %vm461 = vweird.f32 %v455
  %vm462 = vweird.f32 %v456
  %vm463 = vmor %vm461, %vm462
  %v464 = vsel %vm463, %v456, %v460
  %v465 = vand.u32 2147483647, %v455
  %vm466 = vcmp.eq.f32.partialorder %v465, 8.507059e+37
  %v467 = vand.u32 %v455, 2147483648
  %v468 = vor.u32 1.1754944e-38, %v467
  %v469 = vsel %vm466, %v468, %v464
  %v470 = vmul.f32 1.0, %v469
  %v471 = vxor.u32 %v449, 2147483648
  %v472 = vmul.f32 %v471, 1.442695
  %v473 = vpow.pop %v472
  %v474 = vadd.f32 %v473, 1.0
  %v475 = vrcp.pop %v474
  %v476 = vmul.f32 %v474, %v475
  %v477 = vsub.f32 1.0, %v476
  %v478 = vmul.f32 %v475, %v477
  %v479 = vadd.f32 %v475, %v478
  %vm480 = vweird.f32 %v474
  %vm481 = vweird.f32 %v475
  %vm482 = vmor %vm480, %vm481
  %v483 = vsel %vm482, %v475, %v479
  %v484 = vand.u32 2147483647, %v474
  %vm485 = vcmp.eq.f32.partialorder %v484, 8.507059e+37
  %v486 = vand.u32 %v474, 2147483648
  %v487 = vor.u32 1.1754944e-38, %v486
  %v488 = vsel %vm485, %v487, %v483
  %v489 = vmul.f32 1.0, %v488
  %v490 = vtanh.pop %v449
  %v491 = vsel %vm374, %v489, %v490
  %v492 = vsel %vm374, %v386, %v490
  %v493 = vmul.f32 %v470, %v492
  %494 = vrot.lane.b32.xlu0 %v493, 64
  %v495 = vpop.permute.xlu0 %494
  %v496 = vadd.f32 %v493, %v495
  %v497 = vtanh.pop %v496
  %v498 = vmul.f32 %v491, %v497
  %v499 = vpack.c.bf16 %v498, %v498
  %v501 = vsel %vm385, %v499, 0
  %503 = vmatpush.bf16.msra.mxu0 0
  %504 = vmatpush.bf16.msra.mxu0 0
  %505 = vmatpush.bf16.msra.mxu0 0
  %506 = vmatpush.bf16.msra.mxu0 0
  %507 = vmatpush.bf16.msra.mxu0 %v342
  %508 = vmatpush.bf16.msra.mxu0 %v340
  %509 = vmatpush.bf16.msra.mxu0 %v338
  %510 = vmatpush.bf16.msra.mxu0 %v336
  %511 = vmatmul.bf16.gmra.mxu0 %v501
  %v512 = vpop.f32.mrf.mxu0
  %v513 = vadd.f32 %v406, %v512
  %v514 = vpop.f32.mrf.mxu0
  %515 = vdwg.mxu0
  %516 = vmatpush.bf16.msra.mxu0 0
  %517 = vmatpush.bf16.msra.mxu0 0
  %518 = vmatpush.bf16.msra.mxu0 0
  %519 = vmatpush.bf16.msra.mxu0 0
  %520 = vmatpush.bf16.msra.mxu0 %v343
  %521 = vmatpush.bf16.msra.mxu0 %v341
  %522 = vmatpush.bf16.msra.mxu0 %v339
  %523 = vmatpush.bf16.msra.mxu0 %v337
  %524 = vmatmul.bf16.gmra.mxu0 %v501
  %v525 = vpop.f32.mrf.mxu0
  %v526 = vadd.f32 %v419, %v525
  %v527 = vpop.f32.mrf.mxu0
  %528 = vdwg.mxu0
  %v529 = vxor.u32 %v513, 2147483648
  %v530 = vmul.f32 %v529, 1.442695
  %v531 = vpow.pop %v530
  %v532 = vadd.f32 %v531, 1.0
  %v533 = vrcp.pop %v532
  %v534 = vmul.f32 %v532, %v533
  %v535 = vsub.f32 1.0, %v534
  %v536 = vmul.f32 %v533, %v535
  %v537 = vadd.f32 %v533, %v536
  %vm538 = vweird.f32 %v532
  %vm539 = vweird.f32 %v533
  %vm540 = vmor %vm538, %vm539
  %v541 = vsel %vm540, %v533, %v537
  %v542 = vand.u32 2147483647, %v532
  %vm543 = vcmp.eq.f32.partialorder %v542, 8.507059e+37
  %v544 = vand.u32 %v532, 2147483648
  %v545 = vor.u32 1.1754944e-38, %v544
  %v546 = vsel %vm543, %v545, %v541
  %v547 = vmul.f32 1.0, %v546
  %v548 = vxor.u32 %v526, 2147483648
  %v549 = vmul.f32 %v548, 1.442695
  %v550 = vpow.pop %v549
  %v551 = vadd.f32 %v550, 1.0
  %v552 = vrcp.pop %v551
  %v553 = vmul.f32 %v551, %v552
  %v554 = vsub.f32 1.0, %v553
  %v555 = vmul.f32 %v552, %v554
  %v556 = vadd.f32 %v552, %v555
  %vm557 = vweird.f32 %v551
  %vm558 = vweird.f32 %v552
  %vm559 = vmor %vm557, %vm558
  %v560 = vsel %vm559, %v552, %v556
  %v561 = vand.u32 2147483647, %v551
  %vm562 = vcmp.eq.f32.partialorder %v561, 8.507059e+37
  %v563 = vand.u32 %v551, 2147483648
  %v564 = vor.u32 1.1754944e-38, %v563
  %v565 = vsel %vm562, %v564, %v560
  %v566 = vmul.f32 1.0, %v565
  %v567 = vtanh.pop %v526
  %v568 = vsel %vm374, %v566, %v567
  %v569 = vsel %vm374, %v391, %v567
  %v570 = vmul.f32 %v547, %v569
  %571 = vrot.lane.b32.xlu0 %v570, 64
  %v572 = vpop.permute.xlu0 %571
  %v573 = vadd.f32 %v570, %v572
  %v574 = vtanh.pop %v573
  %v575 = vmul.f32 %v568, %v574
  %v576 = vpack.c.bf16 %v575, %v575
  %v578 = vsel %vm385, %v576, 0
  %580 = vmatpush.bf16.msra.mxu0 0
  %581 = vmatpush.bf16.msra.mxu0 0
  %582 = vmatpush.bf16.msra.mxu0 0
  %583 = vmatpush.bf16.msra.mxu0 0
  %584 = vmatpush.bf16.msra.mxu0 %v366
  %585 = vmatpush.bf16.msra.mxu0 %v364
  %586 = vmatpush.bf16.msra.mxu0 %v362
  %587 = vmatpush.bf16.msra.mxu0 %v360
  %588 = vmatmul.bf16.gmra.mxu0 %v578
  %v589 = vpop.f32.mrf.mxu0
  %v590 = vadd.f32 %v370, %v589
  %v591 = vpop.f32.mrf.mxu0
  %592 = vdwg.mxu0
  %593 = vmatpush.bf16.msra.mxu0 0
  %594 = vmatpush.bf16.msra.mxu0 0
  %595 = vmatpush.bf16.msra.mxu0 0
  %596 = vmatpush.bf16.msra.mxu0 0
  %597 = vmatpush.bf16.msra.mxu0 %v367
  %598 = vmatpush.bf16.msra.mxu0 %v365
  %599 = vmatpush.bf16.msra.mxu0 %v363
  %600 = vmatpush.bf16.msra.mxu0 %v361
  %601 = vmatmul.bf16.gmra.mxu0 %v578
  %v602 = vpop.f32.mrf.mxu0
  %v603 = vadd.f32 %v371, %v602
  %v604 = vpop.f32.mrf.mxu0
  %605 = vdwg.mxu0
  %606 = vmatpush.bf16.msra.mxu0 0
  %607 = vmatpush.bf16.msra.mxu0 0
  %608 = vmatpush.bf16.msra.mxu0 0
  %609 = vmatpush.bf16.msra.mxu0 0
  %610 = vmatpush.bf16.msra.mxu0 %v318
  %611 = vmatpush.bf16.msra.mxu0 %v316
  %612 = vmatpush.bf16.msra.mxu0 %v314
  %613 = vmatpush.bf16.msra.mxu0 %v312
  %614 = vmatmul.bf16.gmra.mxu0 %v501
  %v615 = vpop.f32.mrf.mxu0
  %v616 = vadd.f32 %v235, %v615
  %v617 = vpop.f32.mrf.mxu0
  %618 = vdwg.mxu0
  %619 = vmatpush.bf16.msra.mxu0 0
  %620 = vmatpush.bf16.msra.mxu0 0
  %621 = vmatpush.bf16.msra.mxu0 0
  %622 = vmatpush.bf16.msra.mxu0 0
  %623 = vmatpush.bf16.msra.mxu0 %v319
  %624 = vmatpush.bf16.msra.mxu0 %v317
  %625 = vmatpush.bf16.msra.mxu0 %v315
  %626 = vmatpush.bf16.msra.mxu0 %v313
  %627 = vmatmul.bf16.gmra.mxu0 %v501
  %v628 = vpop.f32.mrf.mxu0
  %v629 = vadd.f32 %v276, %v628
  %v630 = vpop.f32.mrf.mxu0
  %631 = vdwg.mxu0
  %v632 = vxor.u32 %v616, 2147483648
  %v633 = vmul.f32 %v632, 1.442695
  %v634 = vpow.pop %v633
  %v635 = vadd.f32 %v634, 1.0
  %v636 = vrcp.pop %v635
  %v637 = vmul.f32 %v635, %v636
  %v638 = vsub.f32 1.0, %v637
  %v639 = vmul.f32 %v636, %v638
  %v640 = vadd.f32 %v636, %v639
  %vm641 = vweird.f32 %v635
  %vm642 = vweird.f32 %v636
  %vm643 = vmor %vm641, %vm642
  %v644 = vsel %vm643, %v636, %v640
  %v645 = vand.u32 2147483647, %v635
  %vm646 = vcmp.eq.f32.partialorder %v645, 8.507059e+37
  %v647 = vand.u32 %v635, 2147483648
  %v648 = vor.u32 1.1754944e-38, %v647
  %v649 = vsel %vm646, %v648, %v644
  %v650 = vmul.f32 1.0, %v649
  %v651 = vxor.u32 %v629, 2147483648
  %v652 = vmul.f32 %v651, 1.442695
  %v653 = vpow.pop %v652
  %v654 = vadd.f32 %v653, 1.0
  %v655 = vrcp.pop %v654
  %v656 = vmul.f32 %v654, %v655
  %v657 = vsub.f32 1.0, %v656
  %v658 = vmul.f32 %v655, %v657
  %v659 = vadd.f32 %v655, %v658
  %vm660 = vweird.f32 %v654
  %vm661 = vweird.f32 %v655
  %vm662 = vmor %vm660, %vm661
  %v663 = vsel %vm662, %v655, %v659
  %v664 = vand.u32 2147483647, %v654
  %vm665 = vcmp.eq.f32.partialorder %v664, 8.507059e+37
  %v666 = vand.u32 %v654, 2147483648
  %v667 = vor.u32 1.1754944e-38, %v666
  %v668 = vsel %vm665, %v667, %v663
  %v669 = vmul.f32 1.0, %v668
  %v670 = vtanh.pop %v629
  %v671 = vsel %vm374, %v669, %v670
  %v672 = vsel %vm374, %v496, %v670
  %v673 = vmul.f32 %v650, %v672
  %674 = vrot.lane.b32.xlu0 %v673, 64
  %v675 = vpop.permute.xlu0 %674
  %v676 = vadd.f32 %v673, %v675
  %v677 = vtanh.pop %v676
  %v678 = vmul.f32 %v671, %v677
  %v679 = vpack.c.bf16 %v678, %v678
  %v681 = vsel %vm385, %v679, 0
  %683 = vmatpush.bf16.msra.mxu0 0
  %684 = vmatpush.bf16.msra.mxu0 0
  %685 = vmatpush.bf16.msra.mxu0 0
  %686 = vmatpush.bf16.msra.mxu0 0
  %687 = vmatpush.bf16.msra.mxu0 %v342
  %688 = vmatpush.bf16.msra.mxu0 %v340
  %689 = vmatpush.bf16.msra.mxu0 %v338
  %690 = vmatpush.bf16.msra.mxu0 %v336
  %691 = vmatmul.bf16.gmra.mxu0 %v681
  %v692 = vpop.f32.mrf.mxu0
  %v693 = vadd.f32 %v590, %v692
  %v694 = vpop.f32.mrf.mxu0
  %695 = vdwg.mxu0
  %696 = vmatpush.bf16.msra.mxu0 0
  %697 = vmatpush.bf16.msra.mxu0 0
  %698 = vmatpush.bf16.msra.mxu0 0
  %699 = vmatpush.bf16.msra.mxu0 0
  %700 = vmatpush.bf16.msra.mxu0 %v343
  %701 = vmatpush.bf16.msra.mxu0 %v341
  %702 = vmatpush.bf16.msra.mxu0 %v339
  %703 = vmatpush.bf16.msra.mxu0 %v337
  %704 = vmatmul.bf16.gmra.mxu0 %v681
  %v705 = vpop.f32.mrf.mxu0
  %v706 = vadd.f32 %v603, %v705
  %v707 = vpop.f32.mrf.mxu0
  %708 = vdwg.mxu0
  %v709 = vxor.u32 %v693, 2147483648
  %v710 = vmul.f32 %v709, 1.442695
  %v711 = vpow.pop %v710
  %v712 = vadd.f32 %v711, 1.0
  %v713 = vrcp.pop %v712
  %v714 = vmul.f32 %v712, %v713
  %v715 = vsub.f32 1.0, %v714
  %v716 = vmul.f32 %v713, %v715
  %v717 = vadd.f32 %v713, %v716
  %vm718 = vweird.f32 %v712
  %vm719 = vweird.f32 %v713
  %vm720 = vmor %vm718, %vm719
  %v721 = vsel %vm720, %v713, %v717
  %v722 = vand.u32 2147483647, %v712
  %vm723 = vcmp.eq.f32.partialorder %v722, 8.507059e+37
  %v724 = vand.u32 %v712, 2147483648
  %v725 = vor.u32 1.1754944e-38, %v724
  %v726 = vsel %vm723, %v725, %v721
  %v727 = vmul.f32 1.0, %v726
  %v728 = vxor.u32 %v706, 2147483648
  %v729 = vmul.f32 %v728, 1.442695
  %v730 = vpow.pop %v729
  %v731 = vadd.f32 %v730, 1.0
  %v732 = vrcp.pop %v731
  %v733 = vmul.f32 %v731, %v732
  %v734 = vsub.f32 1.0, %v733
  %v735 = vmul.f32 %v732, %v734
  %v736 = vadd.f32 %v732, %v735
  %vm737 = vweird.f32 %v731
  %vm738 = vweird.f32 %v732
  %vm739 = vmor %vm737, %vm738
  %v740 = vsel %vm739, %v732, %v736
  %v741 = vand.u32 2147483647, %v731
  %vm742 = vcmp.eq.f32.partialorder %v741, 8.507059e+37
  %v743 = vand.u32 %v731, 2147483648
  %v744 = vor.u32 1.1754944e-38, %v743
  %v745 = vsel %vm742, %v744, %v740
  %v746 = vmul.f32 1.0, %v745
  %v747 = vtanh.pop %v706
  %v748 = vsel %vm374, %v746, %v747
  %v749 = vsel %vm374, %v573, %v747
  %v750 = vmul.f32 %v727, %v749
  %751 = vrot.lane.b32.xlu0 %v750, 64
  %v752 = vpop.permute.xlu0 %751
  %v753 = vadd.f32 %v750, %v752
  %v754 = vtanh.pop %v753
  %v755 = vmul.f32 %v748, %v754
  %v756 = vpack.c.bf16 %v755, %v755
  %v758 = vsel %vm385, %v756, 0
  %760 = vmatpush.bf16.msra.mxu0 0
  %761 = vmatpush.bf16.msra.mxu0 0
  %762 = vmatpush.bf16.msra.mxu0 0
  %763 = vmatpush.bf16.msra.mxu0 0
  %764 = vmatpush.bf16.msra.mxu0 %v366
  %765 = vmatpush.bf16.msra.mxu0 %v364
  %766 = vmatpush.bf16.msra.mxu0 %v362
  %767 = vmatpush.bf16.msra.mxu0 %v360
  %768 = vmatmul.bf16.gmra.mxu0 %v758
  %v769 = vpop.f32.mrf.mxu0
  %v770 = vadd.f32 %v370, %v769
  %v771 = vpop.f32.mrf.mxu0
  %772 = vdwg.mxu0
  %773 = vmatpush.bf16.msra.mxu0 0
  %774 = vmatpush.bf16.msra.mxu0 0
  %775 = vmatpush.bf16.msra.mxu0 0
  %776 = vmatpush.bf16.msra.mxu0 0
  %777 = vmatpush.bf16.msra.mxu0 %v367
  %778 = vmatpush.bf16.msra.mxu0 %v365
  %779 = vmatpush.bf16.msra.mxu0 %v363
  %780 = vmatpush.bf16.msra.mxu0 %v361
  %781 = vmatmul.bf16.gmra.mxu0 %v758
  %v782 = vpop.f32.mrf.mxu0
  %v783 = vadd.f32 %v371, %v782
  %v784 = vpop.f32.mrf.mxu0
  %785 = vdwg.mxu0
  %786 = vmatpush.bf16.msra.mxu0 0
  %787 = vmatpush.bf16.msra.mxu0 0
  %788 = vmatpush.bf16.msra.mxu0 0
  %789 = vmatpush.bf16.msra.mxu0 0
  %790 = vmatpush.bf16.msra.mxu0 %v318
  %791 = vmatpush.bf16.msra.mxu0 %v316
  %792 = vmatpush.bf16.msra.mxu0 %v314
  %793 = vmatpush.bf16.msra.mxu0 %v312
  %794 = vmatmul.bf16.gmra.mxu0 %v681
  %v795 = vpop.f32.mrf.mxu0
  %v796 = vadd.f32 %v238, %v795
  %v797 = vpop.f32.mrf.mxu0
  %798 = vdwg.mxu0
  %799 = vmatpush.bf16.msra.mxu0 0
  %800 = vmatpush.bf16.msra.mxu0 0
  %801 = vmatpush.bf16.msra.mxu0 0
  %802 = vmatpush.bf16.msra.mxu0 0
  %803 = vmatpush.bf16.msra.mxu0 %v319
  %804 = vmatpush.bf16.msra.mxu0 %v317
  %805 = vmatpush.bf16.msra.mxu0 %v315
  %806 = vmatpush.bf16.msra.mxu0 %v313
  %807 = vmatmul.bf16.gmra.mxu0 %v681
  %v808 = vpop.f32.mrf.mxu0
  %v809 = vadd.f32 %v279, %v808
  %v810 = vpop.f32.mrf.mxu0
  %811 = vdwg.mxu0
  %v812 = vxor.u32 %v796, 2147483648
  %v813 = vmul.f32 %v812, 1.442695
  %v814 = vpow.pop %v813
  %v815 = vadd.f32 %v814, 1.0
  %v816 = vrcp.pop %v815
  %v817 = vmul.f32 %v815, %v816
  %v818 = vsub.f32 1.0, %v817
  %v819 = vmul.f32 %v816, %v818
  %v820 = vadd.f32 %v816, %v819
  %vm821 = vweird.f32 %v815
  %vm822 = vweird.f32 %v816
  %vm823 = vmor %vm821, %vm822
  %v824 = vsel %vm823, %v816, %v820
  %v825 = vand.u32 2147483647, %v815
  %vm826 = vcmp.eq.f32.partialorder %v825, 8.507059e+37
  %v827 = vand.u32 %v815, 2147483648
  %v828 = vor.u32 1.1754944e-38, %v827
  %v829 = vsel %vm826, %v828, %v824
  %v830 = vmul.f32 1.0, %v829
  %v831 = vxor.u32 %v809, 2147483648
  %v832 = vmul.f32 %v831, 1.442695
  %v833 = vpow.pop %v832
  %v834 = vadd.f32 %v833, 1.0
  %v835 = vrcp.pop %v834
  %v836 = vmul.f32 %v834, %v835
  %v837 = vsub.f32 1.0, %v836
  %v838 = vmul.f32 %v835, %v837
  %v839 = vadd.f32 %v835, %v838
  %vm840 = vweird.f32 %v834
  %vm841 = vweird.f32 %v835
  %vm842 = vmor %vm840, %vm841
  %v843 = vsel %vm842, %v835, %v839
  %v844 = vand.u32 2147483647, %v834
  %vm845 = vcmp.eq.f32.partialorder %v844, 8.507059e+37
  %v846 = vand.u32 %v834, 2147483648
  %v847 = vor.u32 1.1754944e-38, %v846
  %v848 = vsel %vm845, %v847, %v843
  %v849 = vmul.f32 1.0, %v848
  %v850 = vtanh.pop %v809
  %v851 = vsel %vm374, %v849, %v850
  %v852 = vsel %vm374, %v676, %v850
  %v853 = vmul.f32 %v830, %v852
  %854 = vrot.lane.b32.xlu0 %v853, 64
  %v855 = vpop.permute.xlu0 %854
  %v856 = vadd.f32 %v853, %v855
  %v857 = vtanh.pop %v856
  %v858 = vmul.f32 %v851, %v857
  %v859 = vpack.c.bf16 %v858, %v858
  %v861 = vsel %vm385, %v859, 0
  %863 = vmatpush.bf16.msra.mxu0 0
  %864 = vmatpush.bf16.msra.mxu0 0
  %865 = vmatpush.bf16.msra.mxu0 0
  %866 = vmatpush.bf16.msra.mxu0 0
  %867 = vmatpush.bf16.msra.mxu0 %v342
  %868 = vmatpush.bf16.msra.mxu0 %v340
  %869 = vmatpush.bf16.msra.mxu0 %v338
  %870 = vmatpush.bf16.msra.mxu0 %v336
  %871 = vmatmul.bf16.gmra.mxu0 %v861
  %v872 = vpop.f32.mrf.mxu0
  %v873 = vadd.f32 %v770, %v872
  %v874 = vpop.f32.mrf.mxu0
  %875 = vdwg.mxu0
  %876 = vmatpush.bf16.msra.mxu0 0
  %877 = vmatpush.bf16.msra.mxu0 0
  %878 = vmatpush.bf16.msra.mxu0 0
  %879 = vmatpush.bf16.msra.mxu0 0
  %880 = vmatpush.bf16.msra.mxu0 %v343
  %881 = vmatpush.bf16.msra.mxu0 %v341
  %882 = vmatpush.bf16.msra.mxu0 %v339
  %883 = vmatpush.bf16.msra.mxu0 %v337
  %884 = vmatmul.bf16.gmra.mxu0 %v861
  %v885 = vpop.f32.mrf.mxu0
  %v886 = vadd.f32 %v783, %v885
  %v887 = vpop.f32.mrf.mxu0
  %888 = vdwg.mxu0
  %v889 = vxor.u32 %v873, 2147483648
  %v890 = vmul.f32 %v889, 1.442695
  %v891 = vpow.pop %v890
  %v892 = vadd.f32 %v891, 1.0
  %v893 = vrcp.pop %v892
  %v894 = vmul.f32 %v892, %v893
  %v895 = vsub.f32 1.0, %v894
  %v896 = vmul.f32 %v893, %v895
  %v897 = vadd.f32 %v893, %v896
  %vm898 = vweird.f32 %v892
  %vm899 = vweird.f32 %v893
  %vm900 = vmor %vm898, %vm899
  %v901 = vsel %vm900, %v893, %v897
  %v902 = vand.u32 2147483647, %v892
  %vm903 = vcmp.eq.f32.partialorder %v902, 8.507059e+37
  %v904 = vand.u32 %v892, 2147483648
  %v905 = vor.u32 1.1754944e-38, %v904
  %v906 = vsel %vm903, %v905, %v901
  %v907 = vmul.f32 1.0, %v906
  %v908 = vxor.u32 %v886, 2147483648
  %v909 = vmul.f32 %v908, 1.442695
  %v910 = vpow.pop %v909
  %v911 = vadd.f32 %v910, 1.0
  %v912 = vrcp.pop %v911
  %v913 = vmul.f32 %v911, %v912
  %v914 = vsub.f32 1.0, %v913
  %v915 = vmul.f32 %v912, %v914
  %v916 = vadd.f32 %v912, %v915
  %vm917 = vweird.f32 %v911
  %vm918 = vweird.f32 %v912
  %vm919 = vmor %vm917, %vm918
  %v920 = vsel %vm919, %v912, %v916
  %v921 = vand.u32 2147483647, %v911
  %vm922 = vcmp.eq.f32.partialorder %v921, 8.507059e+37
  %v923 = vand.u32 %v911, 2147483648
  %v924 = vor.u32 1.1754944e-38, %v923
  %v925 = vsel %vm922, %v924, %v920
  %v926 = vmul.f32 1.0, %v925
  %v927 = vtanh.pop %v886
  %v928 = vsel %vm374, %v926, %v927
  %v929 = vsel %vm374, %v753, %v927
  %v930 = vmul.f32 %v907, %v929
  %931 = vrot.lane.b32.xlu0 %v930, 64
  %v932 = vpop.permute.xlu0 %931
  %v933 = vadd.f32 %v930, %v932
  %v934 = vtanh.pop %v933
  %v935 = vmul.f32 %v928, %v934
  %v936 = vpack.c.bf16 %v935, %v935
  %v938 = vsel %vm385, %v936, 0
  %940 = vmatpush.bf16.msra.mxu0 0
  %941 = vmatpush.bf16.msra.mxu0 0
  %942 = vmatpush.bf16.msra.mxu0 0
  %943 = vmatpush.bf16.msra.mxu0 0
  %944 = vmatpush.bf16.msra.mxu0 %v366
  %945 = vmatpush.bf16.msra.mxu0 %v364
  %946 = vmatpush.bf16.msra.mxu0 %v362
  %947 = vmatpush.bf16.msra.mxu0 %v360
  %948 = vmatmul.bf16.gmra.mxu0 %v938
  %v949 = vpop.f32.mrf.mxu0
  %v950 = vadd.f32 %v370, %v949
  %v951 = vpop.f32.mrf.mxu0
  %952 = vdwg.mxu0
  %953 = vmatpush.bf16.msra.mxu0 0
  %954 = vmatpush.bf16.msra.mxu0 0
  %955 = vmatpush.bf16.msra.mxu0 0
  %956 = vmatpush.bf16.msra.mxu0 0
  %957 = vmatpush.bf16.msra.mxu0 %v367
  %958 = vmatpush.bf16.msra.mxu0 %v365
  %959 = vmatpush.bf16.msra.mxu0 %v363
  %960 = vmatpush.bf16.msra.mxu0 %v361
  %961 = vmatmul.bf16.gmra.mxu0 %v938
  %v962 = vpop.f32.mrf.mxu0
  %v963 = vadd.f32 %v371, %v962
  %v964 = vpop.f32.mrf.mxu0
  %965 = vdwg.mxu0
  %966 = vmatpush.bf16.msra.mxu0 0
  %967 = vmatpush.bf16.msra.mxu0 0
  %968 = vmatpush.bf16.msra.mxu0 0
  %969 = vmatpush.bf16.msra.mxu0 0
  %970 = vmatpush.bf16.msra.mxu0 %v318
  %971 = vmatpush.bf16.msra.mxu0 %v316
  %972 = vmatpush.bf16.msra.mxu0 %v314
  %973 = vmatpush.bf16.msra.mxu0 %v312
  %974 = vmatmul.bf16.gmra.mxu0 %v861
  %v975 = vpop.f32.mrf.mxu0
  %v976 = vadd.f32 %v241, %v975
  %v977 = vpop.f32.mrf.mxu0
  %978 = vdwg.mxu0
  %979 = vmatpush.bf16.msra.mxu0 0
  %980 = vmatpush.bf16.msra.mxu0 0
  %981 = vmatpush.bf16.msra.mxu0 0
  %982 = vmatpush.bf16.msra.mxu0 0
  %983 = vmatpush.bf16.msra.mxu0 %v319
  %984 = vmatpush.bf16.msra.mxu0 %v317
  %985 = vmatpush.bf16.msra.mxu0 %v315
  %986 = vmatpush.bf16.msra.mxu0 %v313
  %987 = vmatmul.bf16.gmra.mxu0 %v861
  %v988 = vpop.f32.mrf.mxu0
  %v989 = vadd.f32 %v282, %v988
  %v990 = vpop.f32.mrf.mxu0
  %991 = vdwg.mxu0
  %v992 = vxor.u32 %v976, 2147483648
  %v993 = vmul.f32 %v992, 1.442695
  %v994 = vpow.pop %v993
  %v995 = vadd.f32 %v994, 1.0
  %v996 = vrcp.pop %v995
  %v997 = vmul.f32 %v995, %v996
  %v998 = vsub.f32 1.0, %v997
  %v999 = vmul.f32 %v996, %v998
  %v1000 = vadd.f32 %v996, %v999
  %vm1001 = vweird.f32 %v995
  %vm1002 = vweird.f32 %v996
  %vm1003 = vmor %vm1001, %vm1002
  %v1004 = vsel %vm1003, %v996, %v1000
  %v1005 = vand.u32 2147483647, %v995
  %vm1006 = vcmp.eq.f32.partialorder %v1005, 8.507059e+37
  %v1007 = vand.u32 %v995, 2147483648
  %v1008 = vor.u32 1.1754944e-38, %v1007
  %v1009 = vsel %vm1006, %v1008, %v1004
  %v1010 = vmul.f32 1.0, %v1009
  %v1011 = vxor.u32 %v989, 2147483648
  %v1012 = vmul.f32 %v1011, 1.442695
  %v1013 = vpow.pop %v1012
  %v1014 = vadd.f32 %v1013, 1.0
  %v1015 = vrcp.pop %v1014
  %v1016 = vmul.f32 %v1014, %v1015
  %v1017 = vsub.f32 1.0, %v1016
  %v1018 = vmul.f32 %v1015, %v1017
  %v1019 = vadd.f32 %v1015, %v1018
  %vm1020 = vweird.f32 %v1014
  %vm1021 = vweird.f32 %v1015
  %vm1022 = vmor %vm1020, %vm1021
  %v1023 = vsel %vm1022, %v1015, %v1019
  %v1024 = vand.u32 2147483647, %v1014
  %vm1025 = vcmp.eq.f32.partialorder %v1024, 8.507059e+37
  %v1026 = vand.u32 %v1014, 2147483648
  %v1027 = vor.u32 1.1754944e-38, %v1026
  %v1028 = vsel %vm1025, %v1027, %v1023
  %v1029 = vmul.f32 1.0, %v1028
  %v1030 = vtanh.pop %v989
  %v1031 = vsel %vm374, %v1029, %v1030
  %v1032 = vsel %vm374, %v856, %v1030
  %v1033 = vmul.f32 %v1010, %v1032
  %1034 = vrot.lane.b32.xlu0 %v1033, 64
  %v1035 = vpop.permute.xlu0 %1034
  %v1036 = vadd.f32 %v1033, %v1035
  %v1037 = vtanh.pop %v1036
  %v1038 = vmul.f32 %v1031, %v1037
  %v1039 = vpack.c.bf16 %v1038, %v1038
  %v1041 = vsel %vm385, %v1039, 0
  %1043 = vmatpush.bf16.msra.mxu0 0
  %1044 = vmatpush.bf16.msra.mxu0 0
  %1045 = vmatpush.bf16.msra.mxu0 0
  %1046 = vmatpush.bf16.msra.mxu0 0
  %1047 = vmatpush.bf16.msra.mxu0 %v342
  %1048 = vmatpush.bf16.msra.mxu0 %v340
  %1049 = vmatpush.bf16.msra.mxu0 %v338
  %1050 = vmatpush.bf16.msra.mxu0 %v336
  %1051 = vmatmul.bf16.gmra.mxu0 %v1041
  %v1052 = vpop.f32.mrf.mxu0
  %v1053 = vadd.f32 %v950, %v1052
  %v1054 = vpop.f32.mrf.mxu0
  %1055 = vdwg.mxu0
  %1056 = vmatpush.bf16.msra.mxu0 0
  %1057 = vmatpush.bf16.msra.mxu0 0
  %1058 = vmatpush.bf16.msra.mxu0 0
  %1059 = vmatpush.bf16.msra.mxu0 0
  %1060 = vmatpush.bf16.msra.mxu0 %v343
  %1061 = vmatpush.bf16.msra.mxu0 %v341
  %1062 = vmatpush.bf16.msra.mxu0 %v339
  %1063 = vmatpush.bf16.msra.mxu0 %v337
  %1064 = vmatmul.bf16.gmra.mxu0 %v1041
  %v1065 = vpop.f32.mrf.mxu0
  %v1066 = vadd.f32 %v963, %v1065
  %v1067 = vpop.f32.mrf.mxu0
  %1068 = vdwg.mxu0
  %v1069 = vxor.u32 %v1053, 2147483648
  %v1070 = vmul.f32 %v1069, 1.442695
  %v1071 = vpow.pop %v1070
  %v1072 = vadd.f32 %v1071, 1.0
  %v1073 = vrcp.pop %v1072
  %v1074 = vmul.f32 %v1072, %v1073
  %v1075 = vsub.f32 1.0, %v1074
  %v1076 = vmul.f32 %v1073, %v1075
  %v1077 = vadd.f32 %v1073, %v1076
  %vm1078 = vweird.f32 %v1072
  %vm1079 = vweird.f32 %v1073
  %vm1080 = vmor %vm1078, %vm1079
  %v1081 = vsel %vm1080, %v1073, %v1077
  %v1082 = vand.u32 2147483647, %v1072
  %vm1083 = vcmp.eq.f32.partialorder %v1082, 8.507059e+37
  %v1084 = vand.u32 %v1072, 2147483648
  %v1085 = vor.u32 1.1754944e-38, %v1084
  %v1086 = vsel %vm1083, %v1085, %v1081
  %v1087 = vmul.f32 1.0, %v1086
  %v1088 = vxor.u32 %v1066, 2147483648
  %v1089 = vmul.f32 %v1088, 1.442695
  %v1090 = vpow.pop %v1089
  %v1091 = vadd.f32 %v1090, 1.0
  %v1092 = vrcp.pop %v1091
  %v1093 = vmul.f32 %v1091, %v1092
  %v1094 = vsub.f32 1.0, %v1093
  %v1095 = vmul.f32 %v1092, %v1094
  %v1096 = vadd.f32 %v1092, %v1095
  %vm1097 = vweird.f32 %v1091
  %vm1098 = vweird.f32 %v1092
  %vm1099 = vmor %vm1097, %vm1098
  %v1100 = vsel %vm1099, %v1092, %v1096
  %v1101 = vand.u32 2147483647, %v1091
  %vm1102 = vcmp.eq.f32.partialorder %v1101, 8.507059e+37
  %v1103 = vand.u32 %v1091, 2147483648
  %v1104 = vor.u32 1.1754944e-38, %v1103
  %v1105 = vsel %vm1102, %v1104, %v1100
  %v1106 = vmul.f32 1.0, %v1105
  %v1107 = vtanh.pop %v1066
  %v1108 = vsel %vm374, %v1106, %v1107
  %v1109 = vsel %vm374, %v933, %v1107
  %v1110 = vmul.f32 %v1087, %v1109
  %1111 = vrot.lane.b32.xlu0 %v1110, 64
  %v1112 = vpop.permute.xlu0 %1111
  %v1113 = vadd.f32 %v1110, %v1112
  %v1114 = vtanh.pop %v1113
  %v1115 = vmul.f32 %v1108, %v1114
  %v1116 = vpack.c.bf16 %v1115, %v1115
  %v1118 = vsel %vm385, %v1116, 0
  %1120 = vmatpush.bf16.msra.mxu0 0
  %1121 = vmatpush.bf16.msra.mxu0 0
  %1122 = vmatpush.bf16.msra.mxu0 0
  %1123 = vmatpush.bf16.msra.mxu0 0
  %1124 = vmatpush.bf16.msra.mxu0 %v366
  %1125 = vmatpush.bf16.msra.mxu0 %v364
  %1126 = vmatpush.bf16.msra.mxu0 %v362
  %1127 = vmatpush.bf16.msra.mxu0 %v360
  %1128 = vmatmul.bf16.gmra.mxu0 %v1118
  %v1129 = vpop.f32.mrf.mxu0
  %v1130 = vadd.f32 %v370, %v1129
  %v1131 = vpop.f32.mrf.mxu0
  %1132 = vdwg.mxu0
  %1133 = vmatpush.bf16.msra.mxu0 0
  %1134 = vmatpush.bf16.msra.mxu0 0
  %1135 = vmatpush.bf16.msra.mxu0 0
  %1136 = vmatpush.bf16.msra.mxu0 0
  %1137 = vmatpush.bf16.msra.mxu0 %v367
  %1138 = vmatpush.bf16.msra.mxu0 %v365
  %1139 = vmatpush.bf16.msra.mxu0 %v363
  %1140 = vmatpush.bf16.msra.mxu0 %v361
  %1141 = vmatmul.bf16.gmra.mxu0 %v1118
  %v1142 = vpop.f32.mrf.mxu0
  %v1143 = vadd.f32 %v371, %v1142
  %v1144 = vpop.f32.mrf.mxu0
  %1145 = vdwg.mxu0
  %1146 = vmatpush.bf16.msra.mxu0 0
  %1147 = vmatpush.bf16.msra.mxu0 0
  %1148 = vmatpush.bf16.msra.mxu0 0
  %1149 = vmatpush.bf16.msra.mxu0 0
  %1150 = vmatpush.bf16.msra.mxu0 %v318
  %1151 = vmatpush.bf16.msra.mxu0 %v316
  %1152 = vmatpush.bf16.msra.mxu0 %v314
  %1153 = vmatpush.bf16.msra.mxu0 %v312
  %1154 = vmatmul.bf16.gmra.mxu0 %v1041
  %v1155 = vpop.f32.mrf.mxu0
  %v1156 = vadd.f32 %v244, %v1155
  %v1157 = vpop.f32.mrf.mxu0
  %1158 = vdwg.mxu0
  %1159 = vmatpush.bf16.msra.mxu0 0
  %1160 = vmatpush.bf16.msra.mxu0 0
  %1161 = vmatpush.bf16.msra.mxu0 0
  %1162 = vmatpush.bf16.msra.mxu0 0
  %1163 = vmatpush.bf16.msra.mxu0 %v319
  %1164 = vmatpush.bf16.msra.mxu0 %v317
  %1165 = vmatpush.bf16.msra.mxu0 %v315
  %1166 = vmatpush.bf16.msra.mxu0 %v313
  %1167 = vmatmul.bf16.gmra.mxu0 %v1041
  %v1168 = vpop.f32.mrf.mxu0
  %v1169 = vadd.f32 %v285, %v1168
  %v1170 = vpop.f32.mrf.mxu0
  %1171 = vdwg.mxu0
  %v1172 = vxor.u32 %v1156, 2147483648
  %v1173 = vmul.f32 %v1172, 1.442695
  %v1174 = vpow.pop %v1173
  %v1175 = vadd.f32 %v1174, 1.0
  %v1176 = vrcp.pop %v1175
  %v1177 = vmul.f32 %v1175, %v1176
  %v1178 = vsub.f32 1.0, %v1177
  %v1179 = vmul.f32 %v1176, %v1178
  %v1180 = vadd.f32 %v1176, %v1179
  %vm1181 = vweird.f32 %v1175
  %vm1182 = vweird.f32 %v1176
  %vm1183 = vmor %vm1181, %vm1182
  %v1184 = vsel %vm1183, %v1176, %v1180
  %v1185 = vand.u32 2147483647, %v1175
  %vm1186 = vcmp.eq.f32.partialorder %v1185, 8.507059e+37
  %v1187 = vand.u32 %v1175, 2147483648
  %v1188 = vor.u32 1.1754944e-38, %v1187
  %v1189 = vsel %vm1186, %v1188, %v1184
  %v1190 = vmul.f32 1.0, %v1189
  %v1191 = vxor.u32 %v1169, 2147483648
  %v1192 = vmul.f32 %v1191, 1.442695
  %v1193 = vpow.pop %v1192
  %v1194 = vadd.f32 %v1193, 1.0
  %v1195 = vrcp.pop %v1194
  %v1196 = vmul.f32 %v1194, %v1195
  %v1197 = vsub.f32 1.0, %v1196
  %v1198 = vmul.f32 %v1195, %v1197
  %v1199 = vadd.f32 %v1195, %v1198
  %vm1200 = vweird.f32 %v1194
  %vm1201 = vweird.f32 %v1195
  %vm1202 = vmor %vm1200, %vm1201
  %v1203 = vsel %vm1202, %v1195, %v1199
  %v1204 = vand.u32 2147483647, %v1194
  %vm1205 = vcmp.eq.f32.partialorder %v1204, 8.507059e+37
  %v1206 = vand.u32 %v1194, 2147483648
  %v1207 = vor.u32 1.1754944e-38, %v1206
  %v1208 = vsel %vm1205, %v1207, %v1203
  %v1209 = vmul.f32 1.0, %v1208
  %v1210 = vtanh.pop %v1169
  %v1211 = vsel %vm374, %v1209, %v1210
  %v1212 = vsel %vm374, %v1036, %v1210
  %v1213 = vmul.f32 %v1190, %v1212
  %1214 = vrot.lane.b32.xlu0 %v1213, 64
  %v1215 = vpop.permute.xlu0 %1214
  %v1216 = vadd.f32 %v1213, %v1215
  %v1217 = vtanh.pop %v1216
  %v1218 = vmul.f32 %v1211, %v1217
  %v1219 = vpack.c.bf16 %v1218, %v1218
  %v1221 = vsel %vm385, %v1219, 0
  %1223 = vmatpush.bf16.msra.mxu0 0
  %1224 = vmatpush.bf16.msra.mxu0 0
  %1225 = vmatpush.bf16.msra.mxu0 0
  %1226 = vmatpush.bf16.msra.mxu0 0
  %1227 = vmatpush.bf16.msra.mxu0 %v342
  %1228 = vmatpush.bf16.msra.mxu0 %v340
  %1229 = vmatpush.bf16.msra.mxu0 %v338
  %1230 = vmatpush.bf16.msra.mxu0 %v336
  %1231 = vmatmul.bf16.gmra.mxu0 %v1221
  %v1232 = vpop.f32.mrf.mxu0
  %v1233 = vadd.f32 %v1130, %v1232
  %v1234 = vpop.f32.mrf.mxu0
  %1235 = vdwg.mxu0
  %1236 = vmatpush.bf16.msra.mxu0 0
  %1237 = vmatpush.bf16.msra.mxu0 0
  %1238 = vmatpush.bf16.msra.mxu0 0
  %1239 = vmatpush.bf16.msra.mxu0 0
  %1240 = vmatpush.bf16.msra.mxu0 %v343
  %1241 = vmatpush.bf16.msra.mxu0 %v341
  %1242 = vmatpush.bf16.msra.mxu0 %v339
  %1243 = vmatpush.bf16.msra.mxu0 %v337
  %1244 = vmatmul.bf16.gmra.mxu0 %v1221
  %v1245 = vpop.f32.mrf.mxu0
  %v1246 = vadd.f32 %v1143, %v1245
  %v1247 = vpop.f32.mrf.mxu0
  %1248 = vdwg.mxu0
  %v1249 = vxor.u32 %v1233, 2147483648
  %v1250 = vmul.f32 %v1249, 1.442695
  %v1251 = vpow.pop %v1250
  %v1252 = vadd.f32 %v1251, 1.0
  %v1253 = vrcp.pop %v1252
  %v1254 = vmul.f32 %v1252, %v1253
  %v1255 = vsub.f32 1.0, %v1254
  %v1256 = vmul.f32 %v1253, %v1255
  %v1257 = vadd.f32 %v1253, %v1256
  %vm1258 = vweird.f32 %v1252
  %vm1259 = vweird.f32 %v1253
  %vm1260 = vmor %vm1258, %vm1259
  %v1261 = vsel %vm1260, %v1253, %v1257
  %v1262 = vand.u32 2147483647, %v1252
  %vm1263 = vcmp.eq.f32.partialorder %v1262, 8.507059e+37
  %v1264 = vand.u32 %v1252, 2147483648
  %v1265 = vor.u32 1.1754944e-38, %v1264
  %v1266 = vsel %vm1263, %v1265, %v1261
  %v1267 = vmul.f32 1.0, %v1266
  %v1268 = vxor.u32 %v1246, 2147483648
  %v1269 = vmul.f32 %v1268, 1.442695
  %v1270 = vpow.pop %v1269
  %v1271 = vadd.f32 %v1270, 1.0
  %v1272 = vrcp.pop %v1271
  %v1273 = vmul.f32 %v1271, %v1272
  %v1274 = vsub.f32 1.0, %v1273
  %v1275 = vmul.f32 %v1272, %v1274
  %v1276 = vadd.f32 %v1272, %v1275
  %vm1277 = vweird.f32 %v1271
  %vm1278 = vweird.f32 %v1272
  %vm1279 = vmor %vm1277, %vm1278
  %v1280 = vsel %vm1279, %v1272, %v1276
  %v1281 = vand.u32 2147483647, %v1271
  %vm1282 = vcmp.eq.f32.partialorder %v1281, 8.507059e+37
  %v1283 = vand.u32 %v1271, 2147483648
  %v1284 = vor.u32 1.1754944e-38, %v1283
  %v1285 = vsel %vm1282, %v1284, %v1280
  %v1286 = vmul.f32 1.0, %v1285
  %v1287 = vtanh.pop %v1246
  %v1288 = vsel %vm374, %v1286, %v1287
  %v1289 = vsel %vm374, %v1113, %v1287
  %v1290 = vmul.f32 %v1267, %v1289
  %1291 = vrot.lane.b32.xlu0 %v1290, 64
  %v1292 = vpop.permute.xlu0 %1291
  %v1293 = vadd.f32 %v1290, %v1292
  %v1294 = vtanh.pop %v1293
  %v1295 = vmul.f32 %v1288, %v1294
  %v1296 = vpack.c.bf16 %v1295, %v1295
  %v1298 = vsel %vm385, %v1296, 0
  %1300 = vmatpush.bf16.msra.mxu0 0
  %1301 = vmatpush.bf16.msra.mxu0 0
  %1302 = vmatpush.bf16.msra.mxu0 0
  %1303 = vmatpush.bf16.msra.mxu0 0
  %1304 = vmatpush.bf16.msra.mxu0 %v366
  %1305 = vmatpush.bf16.msra.mxu0 %v364
  %1306 = vmatpush.bf16.msra.mxu0 %v362
  %1307 = vmatpush.bf16.msra.mxu0 %v360
  %1308 = vmatmul.bf16.gmra.mxu0 %v1298
  %v1309 = vpop.f32.mrf.mxu0
  %v1310 = vadd.f32 %v370, %v1309
  %v1311 = vpop.f32.mrf.mxu0
  %1312 = vdwg.mxu0
  %1313 = vmatpush.bf16.msra.mxu0 0
  %1314 = vmatpush.bf16.msra.mxu0 0
  %1315 = vmatpush.bf16.msra.mxu0 0
  %1316 = vmatpush.bf16.msra.mxu0 0
  %1317 = vmatpush.bf16.msra.mxu0 %v367
  %1318 = vmatpush.bf16.msra.mxu0 %v365
  %1319 = vmatpush.bf16.msra.mxu0 %v363
  %1320 = vmatpush.bf16.msra.mxu0 %v361
  %1321 = vmatmul.bf16.gmra.mxu0 %v1298
  %v1322 = vpop.f32.mrf.mxu0
  %v1323 = vadd.f32 %v371, %v1322
  %v1324 = vpop.f32.mrf.mxu0
  %1325 = vdwg.mxu0
  %1326 = vmatpush.bf16.msra.mxu0 0
  %1327 = vmatpush.bf16.msra.mxu0 0
  %1328 = vmatpush.bf16.msra.mxu0 0
  %1329 = vmatpush.bf16.msra.mxu0 0
  %1330 = vmatpush.bf16.msra.mxu0 %v318
  %1331 = vmatpush.bf16.msra.mxu0 %v316
  %1332 = vmatpush.bf16.msra.mxu0 %v314
  %1333 = vmatpush.bf16.msra.mxu0 %v312
  %1334 = vmatmul.bf16.gmra.mxu0 %v1221
  %v1335 = vpop.f32.mrf.mxu0
  %v1336 = vadd.f32 %v247, %v1335
  %v1337 = vpop.f32.mrf.mxu0
  %1338 = vdwg.mxu0
  %1339 = vmatpush.bf16.msra.mxu0 0
  %1340 = vmatpush.bf16.msra.mxu0 0
  %1341 = vmatpush.bf16.msra.mxu0 0
  %1342 = vmatpush.bf16.msra.mxu0 0
  %1343 = vmatpush.bf16.msra.mxu0 %v319
  %1344 = vmatpush.bf16.msra.mxu0 %v317
  %1345 = vmatpush.bf16.msra.mxu0 %v315
  %1346 = vmatpush.bf16.msra.mxu0 %v313
  %1347 = vmatmul.bf16.gmra.mxu0 %v1221
  %v1348 = vpop.f32.mrf.mxu0
  %v1349 = vadd.f32 %v288, %v1348
  %v1350 = vpop.f32.mrf.mxu0
  %1351 = vdwg.mxu0
  %v1352 = vxor.u32 %v1336, 2147483648
  %v1353 = vmul.f32 %v1352, 1.442695
  %v1354 = vpow.pop %v1353
  %v1355 = vadd.f32 %v1354, 1.0
  %v1356 = vrcp.pop %v1355
  %v1357 = vmul.f32 %v1355, %v1356
  %v1358 = vsub.f32 1.0, %v1357
  %v1359 = vmul.f32 %v1356, %v1358
  %v1360 = vadd.f32 %v1356, %v1359
  %vm1361 = vweird.f32 %v1355
  %vm1362 = vweird.f32 %v1356
  %vm1363 = vmor %vm1361, %vm1362
  %v1364 = vsel %vm1363, %v1356, %v1360
  %v1365 = vand.u32 2147483647, %v1355
  %vm1366 = vcmp.eq.f32.partialorder %v1365, 8.507059e+37
  %v1367 = vand.u32 %v1355, 2147483648
  %v1368 = vor.u32 1.1754944e-38, %v1367
  %v1369 = vsel %vm1366, %v1368, %v1364
  %v1370 = vmul.f32 1.0, %v1369
  %v1371 = vxor.u32 %v1349, 2147483648
  %v1372 = vmul.f32 %v1371, 1.442695
  %v1373 = vpow.pop %v1372
  %v1374 = vadd.f32 %v1373, 1.0
  %v1375 = vrcp.pop %v1374
  %v1376 = vmul.f32 %v1374, %v1375
  %v1377 = vsub.f32 1.0, %v1376
  %v1378 = vmul.f32 %v1375, %v1377
  %v1379 = vadd.f32 %v1375, %v1378
  %vm1380 = vweird.f32 %v1374
  %vm1381 = vweird.f32 %v1375
  %vm1382 = vmor %vm1380, %vm1381
  %v1383 = vsel %vm1382, %v1375, %v1379
  %v1384 = vand.u32 2147483647, %v1374
  %vm1385 = vcmp.eq.f32.partialorder %v1384, 8.507059e+37
  %v1386 = vand.u32 %v1374, 2147483648
  %v1387 = vor.u32 1.1754944e-38, %v1386
  %v1388 = vsel %vm1385, %v1387, %v1383
  %v1389 = vmul.f32 1.0, %v1388
  %v1390 = vtanh.pop %v1349
  %v1391 = vsel %vm374, %v1389, %v1390
  %v1392 = vsel %vm374, %v1216, %v1390
  %v1393 = vmul.f32 %v1370, %v1392
  %1394 = vrot.lane.b32.xlu0 %v1393, 64
  %v1395 = vpop.permute.xlu0 %1394
  %v1396 = vadd.f32 %v1393, %v1395
  %v1397 = vtanh.pop %v1396
  %v1398 = vmul.f32 %v1391, %v1397
  %v1399 = vpack.c.bf16 %v1398, %v1398
  %v1401 = vsel %vm385, %v1399, 0
  %1403 = vmatpush.bf16.msra.mxu0 0
  %1404 = vmatpush.bf16.msra.mxu0 0
  %1405 = vmatpush.bf16.msra.mxu0 0
  %1406 = vmatpush.bf16.msra.mxu0 0
  %1407 = vmatpush.bf16.msra.mxu0 %v342
  %1408 = vmatpush.bf16.msra.mxu0 %v340
  %1409 = vmatpush.bf16.msra.mxu0 %v338
  %1410 = vmatpush.bf16.msra.mxu0 %v336
  %1411 = vmatmul.bf16.gmra.mxu0 %v1401
  %v1412 = vpop.f32.mrf.mxu0
  %v1413 = vadd.f32 %v1310, %v1412
  %v1414 = vpop.f32.mrf.mxu0
  %1415 = vdwg.mxu0
  %1416 = vmatpush.bf16.msra.mxu0 0
  %1417 = vmatpush.bf16.msra.mxu0 0
  %1418 = vmatpush.bf16.msra.mxu0 0
  %1419 = vmatpush.bf16.msra.mxu0 0
  %1420 = vmatpush.bf16.msra.mxu0 %v343
  %1421 = vmatpush.bf16.msra.mxu0 %v341
  %1422 = vmatpush.bf16.msra.mxu0 %v339
  %1423 = vmatpush.bf16.msra.mxu0 %v337
  %1424 = vmatmul.bf16.gmra.mxu0 %v1401
  %v1425 = vpop.f32.mrf.mxu0
  %v1426 = vadd.f32 %v1323, %v1425
  %v1427 = vpop.f32.mrf.mxu0
  %1428 = vdwg.mxu0
  %v1429 = vxor.u32 %v1413, 2147483648
  %v1430 = vmul.f32 %v1429, 1.442695
  %v1431 = vpow.pop %v1430
  %v1432 = vadd.f32 %v1431, 1.0
  %v1433 = vrcp.pop %v1432
  %v1434 = vmul.f32 %v1432, %v1433
  %v1435 = vsub.f32 1.0, %v1434
  %v1436 = vmul.f32 %v1433, %v1435
  %v1437 = vadd.f32 %v1433, %v1436
  %vm1438 = vweird.f32 %v1432
  %vm1439 = vweird.f32 %v1433
  %vm1440 = vmor %vm1438, %vm1439
  %v1441 = vsel %vm1440, %v1433, %v1437
  %v1442 = vand.u32 2147483647, %v1432
  %vm1443 = vcmp.eq.f32.partialorder %v1442, 8.507059e+37
  %v1444 = vand.u32 %v1432, 2147483648
  %v1445 = vor.u32 1.1754944e-38, %v1444
  %v1446 = vsel %vm1443, %v1445, %v1441
  %v1447 = vmul.f32 1.0, %v1446
  %v1448 = vxor.u32 %v1426, 2147483648
  %v1449 = vmul.f32 %v1448, 1.442695
  %v1450 = vpow.pop %v1449
  %v1451 = vadd.f32 %v1450, 1.0
  %v1452 = vrcp.pop %v1451
  %v1453 = vmul.f32 %v1451, %v1452
  %v1454 = vsub.f32 1.0, %v1453
  %v1455 = vmul.f32 %v1452, %v1454
  %v1456 = vadd.f32 %v1452, %v1455
  %vm1457 = vweird.f32 %v1451
  %vm1458 = vweird.f32 %v1452
  %vm1459 = vmor %vm1457, %vm1458
  %v1460 = vsel %vm1459, %v1452, %v1456
  %v1461 = vand.u32 2147483647, %v1451
  %vm1462 = vcmp.eq.f32.partialorder %v1461, 8.507059e+37
  %v1463 = vand.u32 %v1451, 2147483648
  %v1464 = vor.u32 1.1754944e-38, %v1463
  %v1465 = vsel %vm1462, %v1464, %v1460
  %v1466 = vmul.f32 1.0, %v1465
  %v1467 = vtanh.pop %v1426
  %v1468 = vsel %vm374, %v1466, %v1467
  %v1469 = vsel %vm374, %v1293, %v1467
  %v1470 = vmul.f32 %v1447, %v1469
  %1471 = vrot.lane.b32.xlu0 %v1470, 64
  %v1472 = vpop.permute.xlu0 %1471
  %v1473 = vadd.f32 %v1470, %v1472
  %v1474 = vtanh.pop %v1473
  %v1475 = vmul.f32 %v1468, %v1474
  %v1476 = vpack.c.bf16 %v1475, %v1475
  %v1478 = vsel %vm385, %v1476, 0
  %1480 = vmatpush.bf16.msra.mxu0 0
  %1481 = vmatpush.bf16.msra.mxu0 0
  %1482 = vmatpush.bf16.msra.mxu0 0
  %1483 = vmatpush.bf16.msra.mxu0 0
  %1484 = vmatpush.bf16.msra.mxu0 %v366
  %1485 = vmatpush.bf16.msra.mxu0 %v364
  %1486 = vmatpush.bf16.msra.mxu0 %v362
  %1487 = vmatpush.bf16.msra.mxu0 %v360
  %1488 = vmatmul.bf16.gmra.mxu0 %v1478
  %v1489 = vpop.f32.mrf.mxu0
  %v1490 = vadd.f32 %v370, %v1489
  %v1491 = vpop.f32.mrf.mxu0
  %1492 = vdwg.mxu0
  %1493 = vmatpush.bf16.msra.mxu0 0
  %1494 = vmatpush.bf16.msra.mxu0 0
  %1495 = vmatpush.bf16.msra.mxu0 0
  %1496 = vmatpush.bf16.msra.mxu0 0
  %1497 = vmatpush.bf16.msra.mxu0 %v367
  %1498 = vmatpush.bf16.msra.mxu0 %v365
  %1499 = vmatpush.bf16.msra.mxu0 %v363
  %1500 = vmatpush.bf16.msra.mxu0 %v361
  %1501 = vmatmul.bf16.gmra.mxu0 %v1478
  %v1502 = vpop.f32.mrf.mxu0
  %v1503 = vadd.f32 %v371, %v1502
  %v1504 = vpop.f32.mrf.mxu0
  %1505 = vdwg.mxu0
  %1506 = vmatpush.bf16.msra.mxu0 0
  %1507 = vmatpush.bf16.msra.mxu0 0
  %1508 = vmatpush.bf16.msra.mxu0 0
  %1509 = vmatpush.bf16.msra.mxu0 0
  %1510 = vmatpush.bf16.msra.mxu0 %v318
  %1511 = vmatpush.bf16.msra.mxu0 %v316
  %1512 = vmatpush.bf16.msra.mxu0 %v314
  %1513 = vmatpush.bf16.msra.mxu0 %v312
  %1514 = vmatmul.bf16.gmra.mxu0 %v1401
  %v1515 = vpop.f32.mrf.mxu0
  %v1516 = vadd.f32 %v250, %v1515
  %v1517 = vpop.f32.mrf.mxu0
  %1518 = vdwg.mxu0
  %1519 = vmatpush.bf16.msra.mxu0 0
  %1520 = vmatpush.bf16.msra.mxu0 0
  %1521 = vmatpush.bf16.msra.mxu0 0
  %1522 = vmatpush.bf16.msra.mxu0 0
  %1523 = vmatpush.bf16.msra.mxu0 %v319
  %1524 = vmatpush.bf16.msra.mxu0 %v317
  %1525 = vmatpush.bf16.msra.mxu0 %v315
  %1526 = vmatpush.bf16.msra.mxu0 %v313
  %1527 = vmatmul.bf16.gmra.mxu0 %v1401
  %v1528 = vpop.f32.mrf.mxu0
  %v1529 = vadd.f32 %v291, %v1528
  %v1530 = vpop.f32.mrf.mxu0
  %1531 = vdwg.mxu0
  %v1532 = vxor.u32 %v1516, 2147483648
  %v1533 = vmul.f32 %v1532, 1.442695
  %v1534 = vpow.pop %v1533
  %v1535 = vadd.f32 %v1534, 1.0
  %v1536 = vrcp.pop %v1535
  %v1537 = vmul.f32 %v1535, %v1536
  %v1538 = vsub.f32 1.0, %v1537
  %v1539 = vmul.f32 %v1536, %v1538
  %v1540 = vadd.f32 %v1536, %v1539
  %vm1541 = vweird.f32 %v1535
  %vm1542 = vweird.f32 %v1536
  %vm1543 = vmor %vm1541, %vm1542
  %v1544 = vsel %vm1543, %v1536, %v1540
  %v1545 = vand.u32 2147483647, %v1535
  %vm1546 = vcmp.eq.f32.partialorder %v1545, 8.507059e+37
  %v1547 = vand.u32 %v1535, 2147483648
  %v1548 = vor.u32 1.1754944e-38, %v1547
  %v1549 = vsel %vm1546, %v1548, %v1544
  %v1550 = vmul.f32 1.0, %v1549
  %v1551 = vxor.u32 %v1529, 2147483648
  %v1552 = vmul.f32 %v1551, 1.442695
  %v1553 = vpow.pop %v1552
  %v1554 = vadd.f32 %v1553, 1.0
  %v1555 = vrcp.pop %v1554
  %v1556 = vmul.f32 %v1554, %v1555
  %v1557 = vsub.f32 1.0, %v1556
  %v1558 = vmul.f32 %v1555, %v1557
  %v1559 = vadd.f32 %v1555, %v1558
  %vm1560 = vweird.f32 %v1554
  %vm1561 = vweird.f32 %v1555
  %vm1562 = vmor %vm1560, %vm1561
  %v1563 = vsel %vm1562, %v1555, %v1559
  %v1564 = vand.u32 2147483647, %v1554
  %vm1565 = vcmp.eq.f32.partialorder %v1564, 8.507059e+37
  %v1566 = vand.u32 %v1554, 2147483648
  %v1567 = vor.u32 1.1754944e-38, %v1566
  %v1568 = vsel %vm1565, %v1567, %v1563
  %v1569 = vmul.f32 1.0, %v1568
  %v1570 = vtanh.pop %v1529
  %v1571 = vsel %vm374, %v1569, %v1570
  %v1572 = vsel %vm374, %v1396, %v1570
  %v1573 = vmul.f32 %v1550, %v1572
  %1574 = vrot.lane.b32.xlu0 %v1573, 64
  %v1575 = vpop.permute.xlu0 %1574
  %v1576 = vadd.f32 %v1573, %v1575
  %v1577 = vtanh.pop %v1576
  %v1578 = vmul.f32 %v1571, %v1577
  %v1579 = vpack.c.bf16 %v1578, %v1578
  %v1581 = vsel %vm385, %v1579, 0
  %1583 = vmatpush.bf16.msra.mxu0 0
  %1584 = vmatpush.bf16.msra.mxu0 0
  %1585 = vmatpush.bf16.msra.mxu0 0
  %1586 = vmatpush.bf16.msra.mxu0 0
  %1587 = vmatpush.bf16.msra.mxu0 %v342
  %1588 = vmatpush.bf16.msra.mxu0 %v340
  %1589 = vmatpush.bf16.msra.mxu0 %v338
  %1590 = vmatpush.bf16.msra.mxu0 %v336
  %1591 = vmatmul.bf16.gmra.mxu0 %v1581
  %v1592 = vpop.f32.mrf.mxu0
  %v1593 = vadd.f32 %v1490, %v1592
  %v1594 = vpop.f32.mrf.mxu0
  %1595 = vdwg.mxu0
  %1596 = vmatpush.bf16.msra.mxu0 0
  %1597 = vmatpush.bf16.msra.mxu0 0
  %1598 = vmatpush.bf16.msra.mxu0 0
  %1599 = vmatpush.bf16.msra.mxu0 0
  %1600 = vmatpush.bf16.msra.mxu0 %v343
  %1601 = vmatpush.bf16.msra.mxu0 %v341
  %1602 = vmatpush.bf16.msra.mxu0 %v339
  %1603 = vmatpush.bf16.msra.mxu0 %v337
  %1604 = vmatmul.bf16.gmra.mxu0 %v1581
  %v1605 = vpop.f32.mrf.mxu0
  %v1606 = vadd.f32 %v1503, %v1605
  %v1607 = vpop.f32.mrf.mxu0
  %1608 = vdwg.mxu0
  %v1609 = vxor.u32 %v1593, 2147483648
  %v1610 = vmul.f32 %v1609, 1.442695
  %v1611 = vpow.pop %v1610
  %v1612 = vadd.f32 %v1611, 1.0
  %v1613 = vrcp.pop %v1612
  %v1614 = vmul.f32 %v1612, %v1613
  %v1615 = vsub.f32 1.0, %v1614
  %v1616 = vmul.f32 %v1613, %v1615
  %v1617 = vadd.f32 %v1613, %v1616
  %vm1618 = vweird.f32 %v1612
  %vm1619 = vweird.f32 %v1613
  %vm1620 = vmor %vm1618, %vm1619
  %v1621 = vsel %vm1620, %v1613, %v1617
  %v1622 = vand.u32 2147483647, %v1612
  %vm1623 = vcmp.eq.f32.partialorder %v1622, 8.507059e+37
  %v1624 = vand.u32 %v1612, 2147483648
  %v1625 = vor.u32 1.1754944e-38, %v1624
  %v1626 = vsel %vm1623, %v1625, %v1621
  %v1627 = vmul.f32 1.0, %v1626
  %v1628 = vxor.u32 %v1606, 2147483648
  %v1629 = vmul.f32 %v1628, 1.442695
  %v1630 = vpow.pop %v1629
  %v1631 = vadd.f32 %v1630, 1.0
  %v1632 = vrcp.pop %v1631
  %v1633 = vmul.f32 %v1631, %v1632
  %v1634 = vsub.f32 1.0, %v1633
  %v1635 = vmul.f32 %v1632, %v1634
  %v1636 = vadd.f32 %v1632, %v1635
  %vm1637 = vweird.f32 %v1631
  %vm1638 = vweird.f32 %v1632
  %vm1639 = vmor %vm1637, %vm1638
  %v1640 = vsel %vm1639, %v1632, %v1636
  %v1641 = vand.u32 2147483647, %v1631
  %vm1642 = vcmp.eq.f32.partialorder %v1641, 8.507059e+37
  %v1643 = vand.u32 %v1631, 2147483648
  %v1644 = vor.u32 1.1754944e-38, %v1643
  %v1645 = vsel %vm1642, %v1644, %v1640
  %v1646 = vmul.f32 1.0, %v1645
  %v1647 = vtanh.pop %v1606
  %v1648 = vsel %vm374, %v1646, %v1647
  %v1649 = vsel %vm374, %v1473, %v1647
  %v1650 = vmul.f32 %v1627, %v1649
  %1651 = vrot.lane.b32.xlu0 %v1650, 64
  %v1652 = vpop.permute.xlu0 %1651
  %v1653 = vadd.f32 %v1650, %v1652
  %v1654 = vtanh.pop %v1653
  %v1655 = vmul.f32 %v1648, %v1654
  %v1656 = vpack.c.bf16 %v1655, %v1655
  %v1658 = vsel %vm385, %v1656, 0
  %1660 = vmatpush.bf16.msra.mxu0 0
  %1661 = vmatpush.bf16.msra.mxu0 0
  %1662 = vmatpush.bf16.msra.mxu0 0
  %1663 = vmatpush.bf16.msra.mxu0 0
  %1664 = vmatpush.bf16.msra.mxu0 %v366
  %1665 = vmatpush.bf16.msra.mxu0 %v364
  %1666 = vmatpush.bf16.msra.mxu0 %v362
  %1667 = vmatpush.bf16.msra.mxu0 %v360
  %1668 = vmatmul.bf16.gmra.mxu0 %v1658
  %v1669 = vpop.f32.mrf.mxu0
  %v1670 = vadd.f32 %v370, %v1669
  %v1671 = vpop.f32.mrf.mxu0
  %1672 = vdwg.mxu0
  %1673 = vmatpush.bf16.msra.mxu0 0
  %1674 = vmatpush.bf16.msra.mxu0 0
  %1675 = vmatpush.bf16.msra.mxu0 0
  %1676 = vmatpush.bf16.msra.mxu0 0
  %1677 = vmatpush.bf16.msra.mxu0 %v367
  %1678 = vmatpush.bf16.msra.mxu0 %v365
  %1679 = vmatpush.bf16.msra.mxu0 %v363
  %1680 = vmatpush.bf16.msra.mxu0 %v361
  %1681 = vmatmul.bf16.gmra.mxu0 %v1658
  %v1682 = vpop.f32.mrf.mxu0
  %v1683 = vadd.f32 %v371, %v1682
  %v1684 = vpop.f32.mrf.mxu0
  %1685 = vdwg.mxu0
  %1686 = vmatpush.bf16.msra.mxu0 0
  %1687 = vmatpush.bf16.msra.mxu0 0
  %1688 = vmatpush.bf16.msra.mxu0 0
  %1689 = vmatpush.bf16.msra.mxu0 0
  %1690 = vmatpush.bf16.msra.mxu0 %v318
  %1691 = vmatpush.bf16.msra.mxu0 %v316
  %1692 = vmatpush.bf16.msra.mxu0 %v314
  %1693 = vmatpush.bf16.msra.mxu0 %v312
  %1694 = vmatmul.bf16.gmra.mxu0 %v1581
  %v1695 = vpop.f32.mrf.mxu0
  %v1696 = vadd.f32 %v253, %v1695
  %v1697 = vpop.f32.mrf.mxu0
  %1698 = vdwg.mxu0
  %1699 = vmatpush.bf16.msra.mxu0 0
  %1700 = vmatpush.bf16.msra.mxu0 0
  %1701 = vmatpush.bf16.msra.mxu0 0
  %1702 = vmatpush.bf16.msra.mxu0 0
  %1703 = vmatpush.bf16.msra.mxu0 %v319
  %1704 = vmatpush.bf16.msra.mxu0 %v317
  %1705 = vmatpush.bf16.msra.mxu0 %v315
  %1706 = vmatpush.bf16.msra.mxu0 %v313
  %1707 = vmatmul.bf16.gmra.mxu0 %v1581
  %v1708 = vpop.f32.mrf.mxu0
  %v1709 = vadd.f32 %v294, %v1708
  %v1710 = vpop.f32.mrf.mxu0
  %1711 = vdwg.mxu0
  %v1712 = vxor.u32 %v1696, 2147483648
  %v1713 = vmul.f32 %v1712, 1.442695
  %v1714 = vpow.pop %v1713
  %v1715 = vadd.f32 %v1714, 1.0
  %v1716 = vrcp.pop %v1715
  %v1717 = vmul.f32 %v1715, %v1716
  %v1718 = vsub.f32 1.0, %v1717
  %v1719 = vmul.f32 %v1716, %v1718
  %v1720 = vadd.f32 %v1716, %v1719
  %vm1721 = vweird.f32 %v1715
  %vm1722 = vweird.f32 %v1716
  %vm1723 = vmor %vm1721, %vm1722
  %v1724 = vsel %vm1723, %v1716, %v1720
  %v1725 = vand.u32 2147483647, %v1715
  %vm1726 = vcmp.eq.f32.partialorder %v1725, 8.507059e+37
  %v1727 = vand.u32 %v1715, 2147483648
  %v1728 = vor.u32 1.1754944e-38, %v1727
  %v1729 = vsel %vm1726, %v1728, %v1724
  %v1730 = vmul.f32 1.0, %v1729
  %v1731 = vxor.u32 %v1709, 2147483648
  %v1732 = vmul.f32 %v1731, 1.442695
  %v1733 = vpow.pop %v1732
  %v1734 = vadd.f32 %v1733, 1.0
  %v1735 = vrcp.pop %v1734
  %v1736 = vmul.f32 %v1734, %v1735
  %v1737 = vsub.f32 1.0, %v1736
  %v1738 = vmul.f32 %v1735, %v1737
  %v1739 = vadd.f32 %v1735, %v1738
  %vm1740 = vweird.f32 %v1734
  %vm1741 = vweird.f32 %v1735
  %vm1742 = vmor %vm1740, %vm1741
  %v1743 = vsel %vm1742, %v1735, %v1739
  %v1744 = vand.u32 2147483647, %v1734
  %vm1745 = vcmp.eq.f32.partialorder %v1744, 8.507059e+37
  %v1746 = vand.u32 %v1734, 2147483648
  %v1747 = vor.u32 1.1754944e-38, %v1746
  %v1748 = vsel %vm1745, %v1747, %v1743
  %v1749 = vmul.f32 1.0, %v1748
  %v1750 = vtanh.pop %v1709
  %v1751 = vsel %vm374, %v1749, %v1750
  %v1752 = vsel %vm374, %v1576, %v1750
  %v1753 = vmul.f32 %v1730, %v1752
  %1754 = vrot.lane.b32.xlu0 %v1753, 64
  %v1755 = vpop.permute.xlu0 %1754
  %v1756 = vadd.f32 %v1753, %v1755
  %v1757 = vtanh.pop %v1756
  %v1758 = vmul.f32 %v1751, %v1757
  %v1759 = vpack.c.bf16 %v1758, %v1758
  %v1761 = vsel %vm385, %v1759, 0
  %1763 = vmatpush.bf16.msra.mxu0 0
  %1764 = vmatpush.bf16.msra.mxu0 0
  %1765 = vmatpush.bf16.msra.mxu0 0
  %1766 = vmatpush.bf16.msra.mxu0 0
  %1767 = vmatpush.bf16.msra.mxu0 %v342
  %1768 = vmatpush.bf16.msra.mxu0 %v340
  %1769 = vmatpush.bf16.msra.mxu0 %v338
  %1770 = vmatpush.bf16.msra.mxu0 %v336
  %1771 = vmatmul.bf16.gmra.mxu0 %v1761
  %v1772 = vpop.f32.mrf.mxu0
  %v1773 = vadd.f32 %v1670, %v1772
  %v1774 = vpop.f32.mrf.mxu0
  %1775 = vdwg.mxu0
  %1776 = vmatpush.bf16.msra.mxu0 0
  %1777 = vmatpush.bf16.msra.mxu0 0
  %1778 = vmatpush.bf16.msra.mxu0 0
  %1779 = vmatpush.bf16.msra.mxu0 0
  %1780 = vmatpush.bf16.msra.mxu0 %v343
  %1781 = vmatpush.bf16.msra.mxu0 %v341
  %1782 = vmatpush.bf16.msra.mxu0 %v339
  %1783 = vmatpush.bf16.msra.mxu0 %v337
  %1784 = vmatmul.bf16.gmra.mxu0 %v1761
  %v1785 = vpop.f32.mrf.mxu0
  %v1786 = vadd.f32 %v1683, %v1785
  %v1787 = vpop.f32.mrf.mxu0
  %1788 = vdwg.mxu0
  %v1789 = vxor.u32 %v1773, 2147483648
  %v1790 = vmul.f32 %v1789, 1.442695
  %v1791 = vpow.pop %v1790
  %v1792 = vadd.f32 %v1791, 1.0
  %v1793 = vrcp.pop %v1792
  %v1794 = vmul.f32 %v1792, %v1793
  %v1795 = vsub.f32 1.0, %v1794
  %v1796 = vmul.f32 %v1793, %v1795
  %v1797 = vadd.f32 %v1793, %v1796
  %vm1798 = vweird.f32 %v1792
  %vm1799 = vweird.f32 %v1793
  %vm1800 = vmor %vm1798, %vm1799
  %v1801 = vsel %vm1800, %v1793, %v1797
  %v1802 = vand.u32 2147483647, %v1792
  %vm1803 = vcmp.eq.f32.partialorder %v1802, 8.507059e+37
  %v1804 = vand.u32 %v1792, 2147483648
  %v1805 = vor.u32 1.1754944e-38, %v1804
  %v1806 = vsel %vm1803, %v1805, %v1801
  %v1807 = vmul.f32 1.0, %v1806
  %v1808 = vxor.u32 %v1786, 2147483648
  %v1809 = vmul.f32 %v1808, 1.442695
  %v1810 = vpow.pop %v1809
  %v1811 = vadd.f32 %v1810, 1.0
  %v1812 = vrcp.pop %v1811
  %v1813 = vmul.f32 %v1811, %v1812
  %v1814 = vsub.f32 1.0, %v1813
  %v1815 = vmul.f32 %v1812, %v1814
  %v1816 = vadd.f32 %v1812, %v1815
  %vm1817 = vweird.f32 %v1811
  %vm1818 = vweird.f32 %v1812
  %vm1819 = vmor %vm1817, %vm1818
  %v1820 = vsel %vm1819, %v1812, %v1816
  %v1821 = vand.u32 2147483647, %v1811
  %vm1822 = vcmp.eq.f32.partialorder %v1821, 8.507059e+37
  %v1823 = vand.u32 %v1811, 2147483648
  %v1824 = vor.u32 1.1754944e-38, %v1823
  %v1825 = vsel %vm1822, %v1824, %v1820
  %v1826 = vmul.f32 1.0, %v1825
  %v1827 = vtanh.pop %v1786
  %v1828 = vsel %vm374, %v1826, %v1827
  %v1829 = vsel %vm374, %v1653, %v1827
  %v1830 = vmul.f32 %v1807, %v1829
  %1831 = vrot.lane.b32.xlu0 %v1830, 64
  %v1832 = vpop.permute.xlu0 %1831
  %v1833 = vadd.f32 %v1830, %v1832
  %v1834 = vtanh.pop %v1833
  %v1835 = vmul.f32 %v1828, %v1834
  %v1836 = vld [vmem:[%s8] sm:$0xff]
  %v1837 = vld [vmem:[%s8 + $0x8] sm:$0xff]
  %v1838 = vld [vmem:[%s8 + $0x10] sm:$0xff]
  %v1839 = vld [vmem:[%s8 + $0x18] sm:$0xff]
  %v1840 = vld [vmem:[%s8 + $0x20] sm:$0xff]
  %v1841 = vld [vmem:[%s8 + $0x28] sm:$0xff]
  %v1842 = vld [vmem:[%s8 + $0x30] sm:$0xff]
  %v1843 = vld [vmem:[%s8 + $0x38] sm:$0xff]
  %v1844 = vld [vmem:[%s9] sm:$0x1]
  %v1846 = vperm.slane %v1844, 0
  %v1849 = vsel %vm385, %v1835, 0
  %1851 = vmatpush.msra.mxu0 0.0
  %1852 = vmatpush.msra.mxu0 0.0
  %1853 = vmatpush.msra.mxu0 0.0
  %1854 = vmatpush.msra.mxu0 0.0
  %1855 = vmatpush.msra.mxu0 0.0
  %1856 = vmatpush.msra.mxu0 0.0
  %1857 = vmatpush.msra.mxu0 0.0
  %1858 = vmatpush.msra.mxu0 0.0
  %1859 = vmatpush.msra.mxu0 %v1843
  %1860 = vmatpush.msra.mxu0 %v1842
  %1861 = vmatpush.msra.mxu0 %v1841
  %1862 = vmatpush.msra.mxu0 %v1840
  %1863 = vmatpush.msra.mxu0 %v1839
  %1864 = vmatpush.msra.mxu0 %v1838
  %1865 = vmatpush.msra.mxu0 %v1837
  %1866 = vmatpush.msra.mxu0 %v1836
  %1867 = vmatmul.f32.gmra.mxu0 %v1849
  %v1868 = vpop.f32.mrf.mxu0
  %v1869 = vadd.f32 %v1846, %v1868
  %1870 = vdwg.mxu0
  %vm1871 = vcmask 130048
  %1872 = vst.msk [vmem:[%s12] sm:$0xff] %vm1871, %v1869
  %1873 = vst.msk [vmem:[%s13] sm:$0xff] %vm385, %v1758
  %s1874 = scalar_lea.vmem %s13, 8
  %1875 = vst.msk [vmem:[%s1874] sm:$0xff] %vm385, %v1835
  %1876 = vst.msk [vmem:[%s14] sm:$0xff] %vm385, %v1756
  %s1877 = scalar_lea.vmem %s14, 8
  %1878 = vst.msk [vmem:[%s1877] sm:$0xff] %vm385, %v1833
  // Predicated region
  $region50: #{name_generator_forward.1} parent=0 // pred_check
    _
  $region51: #{name_generator_forward.1} parent=0 // pred_check_branch
    %1880 = sbr.rel (0) target = $region53
  $region52: #{name_generator_forward.1} parent=0 // pred_region
    _
  $region53: #{name_generator_forward.1} parent=0 // pred_fallthru
    _
  // Predicated region
  $region54: #{name_generator_forward.1} parent=0 // pred_check
    _
  $region55: #{name_generator_forward.1} parent=0 // pred_check_branch
    %1882 = sbr.rel (0) target = $region57
  $region56: #{name_generator_forward.1} parent=0 // pred_region
    _
  $region57: #{name_generator_forward.1} parent=0 // pred_fallthru
    _
  // Predicated region
  $region58: #{name_generator_forward.1} parent=0 // pred_check
    _
  $region59: #{name_generator_forward.1} parent=0 // pred_check_branch
    %1884 = sbr.rel (0) target = $region61
  $region60: #{name_generator_forward.1} parent=0 // pred_region
    _
  $region61: #{name_generator_forward.1} parent=0 // pred_fallthru
    _
  // Predicated region
  $region62: #{name_generator_forward.1} parent=0 // pred_check
    _
  $region63: #{name_generator_forward.1} parent=0 // pred_check_branch
    %1886 = sbr.rel (0) target = $region65
  $region64: #{name_generator_forward.1} parent=0 // pred_region
    _
  $region65: #{name_generator_forward.1} parent=0 // pred_fallthru
    _
  // Predicated region
  $region66: #{name_generator_forward.1} parent=0 // pred_check
    _
  $region67: #{name_generator_forward.1} parent=0 // pred_check_branch
    %1888 = sbr.rel (0) target = $region69
  $region68: #{name_generator_forward.1} parent=0 // pred_region
    _
  $region69: #{name_generator_forward.1} parent=0 // pred_fallthru
    _
  // Predicated region
  $region70: #{name_generator_forward.1} parent=0 // pred_check
    _
  $region71: #{name_generator_forward.1} parent=0 // pred_check_branch
    %1890 = sbr.rel (0) target = $region73
  $region72: #{name_generator_forward.1} parent=0 // pred_region
    _
  $region73: #{name_generator_forward.1} parent=0 // pred_fallthru
    _

</llo_original>
